<compile_context>
chip_gen: v7x
topology: tpu7x:2x2x1
jax: 0.10.0
libtpu: 0.0.40
codegen_flags: <defaults>
</compile_context>

<pallas_src>
import functools

import jax
import jax.numpy as jnp
import numpy as np
from jax import lax
from jax.experimental import pallas as pl
from jax.experimental.pallas import tpu as pltpu


def _mha_kernel(q_ref, k_ref, v_ref, wq_ref, wk_ref, wv_ref, wfc_ref,
                out_ref, attn_ref, o_scratch, *, n_head, d_k, d_v):
    bt, lq, d_model = q_ref.shape
    lk = k_ref.shape[1]

    # Flatten (B_TILE, L, D) -> (B_TILE*L, D) so the projection matmuls get
    # M = B_TILE*L rows on the MXU (lq is a multiple of the 8-row sublane
    # group in the test shapes, so this reshape is layout-free).
    xq = q_ref[...].reshape(bt * lq, d_model)
    xk = k_ref[...].reshape(bt * lk, d_model)
    xv = v_ref[...].reshape(bt * lk, d_model)

    # Projections. wq is pre-scaled by 1/temperature in the wrapper.
    Q = jnp.dot(xq, wq_ref[...], preferred_element_type=jnp.float32)  # (bt*lq, H*dk)
    K = jnp.dot(xk, wk_ref[...], preferred_element_type=jnp.float32)  # (bt*lk, H*dk)
    V = jnp.dot(xv, wv_ref[...], preferred_element_type=jnp.float32)  # (bt*lk, H*dv)

    attn_sum = jnp.zeros((bt, lq, lk), jnp.float32)

    # Static unroll over heads; each head uses a batched dot_general over the
    # batch dim (no materialized transpose, no concatenate).
    for h in range(n_head):
        Qh = Q[:, h * d_k:(h + 1) * d_k].reshape(bt, lq, d_k)
        Kh = K[:, h * d_k:(h + 1) * d_k].reshape(bt, lk, d_k)
        Vh = V[:, h * d_v:(h + 1) * d_v].reshape(bt, lk, d_v)

        # scores[b, q, k] = sum_d Qh[b, q, d] * Kh[b, k, d]
        scores = lax.dot_general(
            Qh, Kh, (((2,), (2,)), ((0,), (0,))),
            preferred_element_type=jnp.float32)                      # (bt, lq, lk)

        # numerically stable softmax along last axis (matches F.softmax)
        scores = scores - jnp.max(scores, axis=-1, keepdims=True)
        e = jnp.exp(scores)
        attn_h = e / jnp.sum(e, axis=-1, keepdims=True)
        attn_sum = attn_sum + attn_h

        # out_h[b, q, d] = sum_k attn_h[b, q, k] * Vh[b, k, d]
        out_h = lax.dot_general(
            attn_h, Vh, (((2,), (1,)), ((0,), (0,))),
            preferred_element_type=jnp.float32)                      # (bt, lq, dv)

        o_scratch[:, h * d_v:(h + 1) * d_v] = out_h.reshape(bt * lq, d_v)

    # Final FC over flattened rows, then un-flatten.
    out = jnp.dot(o_scratch[...], wfc_ref[...],
                  preferred_element_type=jnp.float32)                # (bt*lq, d_model)
    out_ref[...] = out.reshape(bt, lq, d_model).astype(out_ref.dtype)
    attn_ref[...] = (attn_sum * jnp.float32(1.0 / n_head)).astype(attn_ref.dtype)


def multi_head_attention(q, k, v, wq, wk, wv, wfc, *,
                         n_head, d_k, d_v, temperature=0.5, b_tile=None):
    """q,k,v: (B, L, d_model). wq/wk/wv: (n_head*d, d_model) torch-style.
    wfc: (d_model, n_head*d_v) torch-style. Returns (out, attn_mean)."""
    B, Lq, d_model = q.shape
    Lk = k.shape[1]
    Lv = v.shape[1]

    # Fold as many batches as reasonable into one block (all of them for the
    # small test shapes). For large B/L, pick b_tile so the block fits VMEM.
    if b_tile is None:
        b_tile = B

    # Pre-transpose torch Linear weights so the kernel computes x @ W, and
    # fold the 1/temperature scale into the Q weight (free on the MXU).
    wq_t = (wq.T / jnp.float32(temperature)).astype(jnp.float32)  # (D, H*dk)
    wk_t = wk.T.astype(jnp.float32)                               # (D, H*dk)
    wv_t = wv.T.astype(jnp.float32)                               # (D, H*dv)
    wfc_t = wfc.T.astype(jnp.float32)                             # (H*dv, D)

    kernel = functools.partial(_mha_kernel, n_head=n_head, d_k=d_k, d_v=d_v)

    out_shapes = (
        jax.ShapeDtypeStruct((B, Lq, d_model), jnp.float32),
        jax.ShapeDtypeStruct((B, Lq, Lk), jnp.float32),
    )

    grid_spec = pltpu.PrefetchScalarGridSpec(
        num_scalar_prefetch=0,
        grid=(pl.cdiv(B, b_tile),),
        in_specs=[
            pl.BlockSpec((b_tile, Lq, d_model), lambda b: (b, 0, 0)),
            pl.BlockSpec((b_tile, Lk, d_model), lambda b: (b, 0, 0)),
            pl.BlockSpec((b_tile, Lv, d_model), lambda b: (b, 0, 0)),
            # Constant index_maps -> weights stay resident in VMEM.
            pl.BlockSpec(wq_t.shape, lambda b: (0, 0)),
            pl.BlockSpec(wk_t.shape, lambda b: (0, 0)),
            pl.BlockSpec(wv_t.shape, lambda b: (0, 0)),
            pl.BlockSpec(wfc_t.shape, lambda b: (0, 0)),
        ],
        out_specs=[
            pl.BlockSpec((b_tile, Lq, d_model), lambda b: (b, 0, 0)),
            pl.BlockSpec((b_tile, Lq, Lk), lambda b: (b, 0, 0)),
        ],
        scratch_shapes=[
            pltpu.VMEM((b_tile * Lq, n_head * d_v), jnp.float32),
        ],
    )

    return pl.pallas_call(
        kernel,
        out_shape=out_shapes,
        grid_spec=grid_spec,
        compiler_params=pltpu.CompilerParams(
            dimension_semantics=("parallel",)),
    )(q, k, v, wq_t, wk_t, wv_t, wfc_t)


def _reference(q, k, v, wq, wk, wv, wfc, *, n_head, d_k, d_v, temperature=0.5):
    """Pure-JAX reference mirroring the PyTorch forward (mask=None)."""
    B, Lq, d_model = q.shape
    Lk = k.shape[1]
    Q = (q @ wq.T).reshape(B, Lq, n_head, d_k).transpose(0, 2, 1, 3)
    K = (k @ wk.T).reshape(B, Lk, n_head, d_k).transpose(0, 2, 1, 3)
    V = (v @ wv.T).reshape(B, Lk, n_head, d_v).transpose(0, 2, 1, 3)
    attn = jnp.einsum("bhqd,bhkd->bhqk", Q / temperature, K)
    attn = jax.nn.softmax(attn, axis=-1)
    out = jnp.einsum("bhqk,bhkd->bhqd", attn, V)
    out = out.transpose(0, 2, 1, 3).reshape(B, Lq, n_head * d_v)
    out = out @ wfc.T
    return out, jnp.mean(attn, axis=1)


def _eye_init(out_features, in_features):
    """nn.init.eye_ on a (out_features, in_features) weight."""
    w = np.zeros((out_features, in_features), dtype=np.float32)
    n = min(out_features, in_features)
    w[np.arange(n), np.arange(n)] = 1.0
    return jnp.asarray(w)


if __name__ == "__main__":
    # Small shapes consistent with the module.
    B, L, d_model = 2, 8, 32
    n_head, d_k, d_v = 4, 8, 8

    key = jax.random.PRNGKey(0)
    kq, kk, kv = jax.random.split(key, 3)
    q = jax.random.normal(kq, (B, L, d_model), dtype=jnp.float32)
    k = jax.random.normal(kk, (B, L, d_model), dtype=jnp.float32)
    v = jax.random.normal(kv, (B, L, d_model), dtype=jnp.float32)

    # Deterministic parameter init, matching nn.init.eye_ in __init__.
    wq = _eye_init(n_head * d_k, d_model)
    wk = _eye_init(n_head * d_k, d_model)
    wv = _eye_init(n_head * d_v, d_model)
    wfc = _eye_init(d_model, n_head * d_v)

    out, attn = multi_head_attention(q, k, v, wq, wk, wv, wfc,
                                     n_head=n_head, d_k=d_k, d_v=d_v,
                                     temperature=0.5)
    jax.block_until_ready((out, attn))

    # Sanity check against the pure-JAX reference of the PyTorch forward.
    ref_out, ref_attn = _reference(q, k, v, wq, wk, wv, wfc,
                                   n_head=n_head, d_k=d_k, d_v=d_v,
                                   temperature=0.5)
    assert out.shape == (B, L, d_model)
    assert attn.shape == (B, L, L)
    np.testing.assert_allclose(np.asarray(out), np.asarray(ref_out),
                               rtol=1e-5, atol=1e-5)
    np.testing.assert_allclose(np.asarray(attn), np.asarray(ref_attn),
                               rtol=1e-5, atol=1e-5)
    print("KERNEL_OK")
</pallas_src>

<mosaic_0001>
module attributes {stable_mosaic.version = 11 : i64} {
  func.func @_mha_kernel(%arg0: i32, %arg1: memref<2x8x32xf32, #tpu.memory_space<vmem>>, %arg2: memref<2x8x32xf32, #tpu.memory_space<vmem>>, %arg3: memref<2x8x32xf32, #tpu.memory_space<vmem>>, %arg4: memref<32x32xf32, #tpu.memory_space<vmem>>, %arg5: memref<32x32xf32, #tpu.memory_space<vmem>>, %arg6: memref<32x32xf32, #tpu.memory_space<vmem>>, %arg7: memref<32x32xf32, #tpu.memory_space<vmem>>, %arg8: memref<2x8x32xf32, #tpu.memory_space<vmem>>, %arg9: memref<2x8x8xf32, #tpu.memory_space<vmem>>, %arg10: memref<16x32xf32, #tpu.memory_space<vmem>>) attributes {dimension_semantics = [#tpu.dimension_semantics<parallel>], iteration_bounds = array<i64: 1>, scalar_prefetch = 0 : i64, scratch_operands = 1 : i64, tpu.core_type = #tpu.core_type<tc>, window_params = [{transform_indices = @transform_0, window_bounds = array<i64: 2, 8, 32>}, {transform_indices = @transform_1, window_bounds = array<i64: 2, 8, 32>}, {transform_indices = @transform_2, window_bounds = array<i64: 2, 8, 32>}, {pipeline_mode = #tpu.pipeline_mode<synchronous>, transform_indices = @transform_3, window_bounds = array<i64: 32, 32>}, {pipeline_mode = #tpu.pipeline_mode<synchronous>, transform_indices = @transform_4, window_bounds = array<i64: 32, 32>}, {pipeline_mode = #tpu.pipeline_mode<synchronous>, transform_indices = @transform_5, window_bounds = array<i64: 32, 32>}, {pipeline_mode = #tpu.pipeline_mode<synchronous>, transform_indices = @transform_6, window_bounds = array<i64: 32, 32>}, {transform_indices = @transform_7, window_bounds = array<i64: 2, 8, 32>}, {transform_indices = @transform_8, window_bounds = array<i64: 2, 8, 8>}]} {
    %c0 = arith.constant 0 : index
    %c0_0 = arith.constant 0 : index
    %c0_1 = arith.constant 0 : index
    %0 = vector.load %arg1[%c0, %c0_0, %c0_1] : memref<2x8x32xf32, #tpu.memory_space<vmem>>, vector<2x8x32xf32>
    %1 = vector.shape_cast %0 : vector<2x8x32xf32> to vector<16x32xf32>
    %c0_2 = arith.constant 0 : index
    %c0_3 = arith.constant 0 : index
    %c0_4 = arith.constant 0 : index
    %2 = vector.load %arg2[%c0_2, %c0_3, %c0_4] : memref<2x8x32xf32, #tpu.memory_space<vmem>>, vector<2x8x32xf32>
    %3 = vector.shape_cast %2 : vector<2x8x32xf32> to vector<16x32xf32>
    %c0_5 = arith.constant 0 : index
    %c0_6 = arith.constant 0 : index
    %c0_7 = arith.constant 0 : index
    %4 = vector.load %arg3[%c0_5, %c0_6, %c0_7] : memref<2x8x32xf32, #tpu.memory_space<vmem>>, vector<2x8x32xf32>
    %5 = vector.shape_cast %4 : vector<2x8x32xf32> to vector<16x32xf32>
    %c0_8 = arith.constant 0 : index
    %c0_9 = arith.constant 0 : index
    %6 = vector.load %arg4[%c0_8, %c0_9] : memref<32x32xf32, #tpu.memory_space<vmem>>, vector<32x32xf32>
    %cst = arith.constant dense<0.000000e+00> : vector<16x32xf32>
    %7 = tpu.matmul %1, %6, %cst {dimension_numbers = #tpu.dot_dimension_numbers<[1], [0], [0], [1], [0, 0, 1, 1], [], []>} : vector<16x32xf32>, vector<32x32xf32>, vector<16x32xf32> -> vector<16x32xf32>
    %c0_10 = arith.constant 0 : index
    %c0_11 = arith.constant 0 : index
    %8 = vector.load %arg5[%c0_10, %c0_11] : memref<32x32xf32, #tpu.memory_space<vmem>>, vector<32x32xf32>
    %cst_12 = arith.constant dense<0.000000e+00> : vector<16x32xf32>
    %9 = tpu.matmul %3, %8, %cst_12 {dimension_numbers = #tpu.dot_dimension_numbers<[1], [0], [0], [1], [0, 0, 1, 1], [], []>} : vector<16x32xf32>, vector<32x32xf32>, vector<16x32xf32> -> vector<16x32xf32>
    %c0_13 = arith.constant 0 : index
    %c0_14 = arith.constant 0 : index
    %10 = vector.load %arg6[%c0_13, %c0_14] : memref<32x32xf32, #tpu.memory_space<vmem>>, vector<32x32xf32>
    %cst_15 = arith.constant dense<0.000000e+00> : vector<16x32xf32>
    %11 = tpu.matmul %5, %10, %cst_15 {dimension_numbers = #tpu.dot_dimension_numbers<[1], [0], [0], [1], [0, 0, 1, 1], [], []>} : vector<16x32xf32>, vector<32x32xf32>, vector<16x32xf32> -> vector<16x32xf32>
    %cst_16 = arith.constant 0.000000e+00 : f32
    %12 = vector.broadcast %cst_16 : f32 to vector<2x8x8xf32>
    %13 = vector.extract_strided_slice %7 {offsets = [0, 0], sizes = [16, 8], strides = [1, 1]} : vector<16x32xf32> to vector<16x8xf32>
    %14 = vector.shape_cast %13 : vector<16x8xf32> to vector<2x8x8xf32>
    %15 = vector.extract_strided_slice %9 {offsets = [0, 0], sizes = [16, 8], strides = [1, 1]} : vector<16x32xf32> to vector<16x8xf32>
    %16 = vector.shape_cast %15 : vector<16x8xf32> to vector<2x8x8xf32>
    %17 = vector.extract_strided_slice %11 {offsets = [0, 0], sizes = [16, 8], strides = [1, 1]} : vector<16x32xf32> to vector<16x8xf32>
    %18 = vector.shape_cast %17 : vector<16x8xf32> to vector<2x8x8xf32>
    %cst_17 = arith.constant dense<0.000000e+00> : vector<2x8x8xf32>
    %19 = tpu.matmul %14, %16, %cst_17 {dimension_numbers = #tpu.dot_dimension_numbers<[2], [2], [1], [1], [0, 0, 0, 1, 1, 1], [0], [0]>} : vector<2x8x8xf32>, vector<2x8x8xf32>, vector<2x8x8xf32> -> vector<2x8x8xf32>
    %cst_18 = arith.constant dense<0xFF800000> : vector<2x8xf32>
    %20 = vector.multi_reduction <maximumf>, %19, %cst_18 [2] : vector<2x8x8xf32> to vector<2x8xf32>
    %21 = vector.shape_cast %20 : vector<2x8xf32> to vector<2x8x1xf32>
    %22 = vector.broadcast %21 : vector<2x8x1xf32> to vector<2x8x8xf32>
    %23 = arith.subf %19, %22 : vector<2x8x8xf32>
    %24 = math.exp %23 : vector<2x8x8xf32>
    %cst_19 = arith.constant dense<0.000000e+00> : vector<2x8xf32>
    %25 = vector.multi_reduction <add>, %24, %cst_19 [2] : vector<2x8x8xf32> to vector<2x8xf32>
    %26 = vector.shape_cast %25 : vector<2x8xf32> to vector<2x8x1xf32>
    %27 = vector.broadcast %26 : vector<2x8x1xf32> to vector<2x8x8xf32>
    %28 = arith.divf %24, %27 : vector<2x8x8xf32>
    %29 = arith.addf %12, %28 : vector<2x8x8xf32>
    %cst_20 = arith.constant dense<0.000000e+00> : vector<2x8x8xf32>
    %30 = tpu.matmul %28, %18, %cst_20 {dimension_numbers = #tpu.dot_dimension_numbers<[2], [1], [1], [2], [0, 0, 0, 1, 1, 2], [0], [0]>} : vector<2x8x8xf32>, vector<2x8x8xf32>, vector<2x8x8xf32> -> vector<2x8x8xf32>
    %31 = vector.shape_cast %30 : vector<2x8x8xf32> to vector<16x8xf32>
    %c0_21 = arith.constant 0 : index
    %c0_22 = arith.constant 0 : index
    %32 = vector.load %arg10[%c0_21, %c0_22] : memref<16x32xf32, #tpu.memory_space<vmem>>, vector<16x8xf32>
    tpu.vector_store %arg10[%c0_21, %c0_22], %31 {strides = array<i32>} : memref<16x32xf32, #tpu.memory_space<vmem>>, vector<16x8xf32>,
    %33 = vector.extract_strided_slice %7 {offsets = [0, 8], sizes = [16, 8], strides = [1, 1]} : vector<16x32xf32> to vector<16x8xf32>
    %34 = vector.shape_cast %33 : vector<16x8xf32> to vector<2x8x8xf32>
    %35 = vector.extract_strided_slice %9 {offsets = [0, 8], sizes = [16, 8], strides = [1, 1]} : vector<16x32xf32> to vector<16x8xf32>
    %36 = vector.shape_cast %35 : vector<16x8xf32> to vector<2x8x8xf32>
    %37 = vector.extract_strided_slice %11 {offsets = [0, 8], sizes = [16, 8], strides = [1, 1]} : vector<16x32xf32> to vector<16x8xf32>
    %38 = vector.shape_cast %37 : vector<16x8xf32> to vector<2x8x8xf32>
    %cst_23 = arith.constant dense<0.000000e+00> : vector<2x8x8xf32>
    %39 = tpu.matmul %34, %36, %cst_23 {dimension_numbers = #tpu.dot_dimension_numbers<[2], [2], [1], [1], [0, 0, 0, 1, 1, 1], [0], [0]>} : vector<2x8x8xf32>, vector<2x8x8xf32>, vector<2x8x8xf32> -> vector<2x8x8xf32>
    %cst_24 = arith.constant dense<0xFF800000> : vector<2x8xf32>
    %40 = vector.multi_reduction <maximumf>, %39, %cst_24 [2] : vector<2x8x8xf32> to vector<2x8xf32>
    %41 = vector.shape_cast %40 : vector<2x8xf32> to vector<2x8x1xf32>
    %42 = vector.broadcast %41 : vector<2x8x1xf32> to vector<2x8x8xf32>
    %43 = arith.subf %39, %42 : vector<2x8x8xf32>
    %44 = math.exp %43 : vector<2x8x8xf32>
    %cst_25 = arith.constant dense<0.000000e+00> : vector<2x8xf32>
    %45 = vector.multi_reduction <add>, %44, %cst_25 [2] : vector<2x8x8xf32> to vector<2x8xf32>
    %46 = vector.shape_cast %45 : vector<2x8xf32> to vector<2x8x1xf32>
    %47 = vector.broadcast %46 : vector<2x8x1xf32> to vector<2x8x8xf32>
    %48 = arith.divf %44, %47 : vector<2x8x8xf32>
    %49 = arith.addf %29, %48 : vector<2x8x8xf32>
    %cst_26 = arith.constant dense<0.000000e+00> : vector<2x8x8xf32>
    %50 = tpu.matmul %48, %38, %cst_26 {dimension_numbers = #tpu.dot_dimension_numbers<[2], [1], [1], [2], [0, 0, 0, 1, 1, 2], [0], [0]>} : vector<2x8x8xf32>, vector<2x8x8xf32>, vector<2x8x8xf32> -> vector<2x8x8xf32>
    %51 = vector.shape_cast %50 : vector<2x8x8xf32> to vector<16x8xf32>
    %c0_27 = arith.constant 0 : index
    %c8 = arith.constant 8 : index
    %52 = vector.load %arg10[%c0_27, %c8] : memref<16x32xf32, #tpu.memory_space<vmem>>, vector<16x8xf32>
    tpu.vector_store %arg10[%c0_27, %c8], %51 {strides = array<i32>} : memref<16x32xf32, #tpu.memory_space<vmem>>, vector<16x8xf32>,
    %53 = vector.extract_strided_slice %7 {offsets = [0, 16], sizes = [16, 8], strides = [1, 1]} : vector<16x32xf32> to vector<16x8xf32>
    %54 = vector.shape_cast %53 : vector<16x8xf32> to vector<2x8x8xf32>
    %55 = vector.extract_strided_slice %9 {offsets = [0, 16], sizes = [16, 8], strides = [1, 1]} : vector<16x32xf32> to vector<16x8xf32>
    %56 = vector.shape_cast %55 : vector<16x8xf32> to vector<2x8x8xf32>
    %57 = vector.extract_strided_slice %11 {offsets = [0, 16], sizes = [16, 8], strides = [1, 1]} : vector<16x32xf32> to vector<16x8xf32>
    %58 = vector.shape_cast %57 : vector<16x8xf32> to vector<2x8x8xf32>
    %cst_28 = arith.constant dense<0.000000e+00> : vector<2x8x8xf32>
    %59 = tpu.matmul %54, %56, %cst_28 {dimension_numbers = #tpu.dot_dimension_numbers<[2], [2], [1], [1], [0, 0, 0, 1, 1, 1], [0], [0]>} : vector<2x8x8xf32>, vector<2x8x8xf32>, vector<2x8x8xf32> -> vector<2x8x8xf32>
    %cst_29 = arith.constant dense<0xFF800000> : vector<2x8xf32>
    %60 = vector.multi_reduction <maximumf>, %59, %cst_29 [2] : vector<2x8x8xf32> to vector<2x8xf32>
    %61 = vector.shape_cast %60 : vector<2x8xf32> to vector<2x8x1xf32>
    %62 = vector.broadcast %61 : vector<2x8x1xf32> to vector<2x8x8xf32>
    %63 = arith.subf %59, %62 : vector<2x8x8xf32>
    %64 = math.exp %63 : vector<2x8x8xf32>
    %cst_30 = arith.constant dense<0.000000e+00> : vector<2x8xf32>
    %65 = vector.multi_reduction <add>, %64, %cst_30 [2] : vector<2x8x8xf32> to vector<2x8xf32>
    %66 = vector.shape_cast %65 : vector<2x8xf32> to vector<2x8x1xf32>
    %67 = vector.broadcast %66 : vector<2x8x1xf32> to vector<2x8x8xf32>
    %68 = arith.divf %64, %67 : vector<2x8x8xf32>
    %69 = arith.addf %49, %68 : vector<2x8x8xf32>
    %cst_31 = arith.constant dense<0.000000e+00> : vector<2x8x8xf32>
    %70 = tpu.matmul %68, %58, %cst_31 {dimension_numbers = #tpu.dot_dimension_numbers<[2], [1], [1], [2], [0, 0, 0, 1, 1, 2], [0], [0]>} : vector<2x8x8xf32>, vector<2x8x8xf32>, vector<2x8x8xf32> -> vector<2x8x8xf32>
    %71 = vector.shape_cast %70 : vector<2x8x8xf32> to vector<16x8xf32>
    %c0_32 = arith.constant 0 : index
    %c16 = arith.constant 16 : index
    %72 = vector.load %arg10[%c0_32, %c16] : memref<16x32xf32, #tpu.memory_space<vmem>>, vector<16x8xf32>
    tpu.vector_store %arg10[%c0_32, %c16], %71 {strides = array<i32>} : memref<16x32xf32, #tpu.memory_space<vmem>>, vector<16x8xf32>,
    %73 = vector.extract_strided_slice %7 {offsets = [0, 24], sizes = [16, 8], strides = [1, 1]} : vector<16x32xf32> to vector<16x8xf32>
    %74 = vector.shape_cast %73 : vector<16x8xf32> to vector<2x8x8xf32>
    %75 = vector.extract_strided_slice %9 {offsets = [0, 24], sizes = [16, 8], strides = [1, 1]} : vector<16x32xf32> to vector<16x8xf32>
    %76 = vector.shape_cast %75 : vector<16x8xf32> to vector<2x8x8xf32>
    %77 = vector.extract_strided_slice %11 {offsets = [0, 24], sizes = [16, 8], strides = [1, 1]} : vector<16x32xf32> to vector<16x8xf32>
    %78 = vector.shape_cast %77 : vector<16x8xf32> to vector<2x8x8xf32>
    %cst_33 = arith.constant dense<0.000000e+00> : vector<2x8x8xf32>
    %79 = tpu.matmul %74, %76, %cst_33 {dimension_numbers = #tpu.dot_dimension_numbers<[2], [2], [1], [1], [0, 0, 0, 1, 1, 1], [0], [0]>} : vector<2x8x8xf32>, vector<2x8x8xf32>, vector<2x8x8xf32> -> vector<2x8x8xf32>
    %cst_34 = arith.constant dense<0xFF800000> : vector<2x8xf32>
    %80 = vector.multi_reduction <maximumf>, %79, %cst_34 [2] : vector<2x8x8xf32> to vector<2x8xf32>
    %81 = vector.shape_cast %80 : vector<2x8xf32> to vector<2x8x1xf32>
    %82 = vector.broadcast %81 : vector<2x8x1xf32> to vector<2x8x8xf32>
    %83 = arith.subf %79, %82 : vector<2x8x8xf32>
    %84 = math.exp %83 : vector<2x8x8xf32>
    %cst_35 = arith.constant dense<0.000000e+00> : vector<2x8xf32>
    %85 = vector.multi_reduction <add>, %84, %cst_35 [2] : vector<2x8x8xf32> to vector<2x8xf32>
    %86 = vector.shape_cast %85 : vector<2x8xf32> to vector<2x8x1xf32>
    %87 = vector.broadcast %86 : vector<2x8x1xf32> to vector<2x8x8xf32>
    %88 = arith.divf %84, %87 : vector<2x8x8xf32>
    %89 = arith.addf %69, %88 : vector<2x8x8xf32>
    %cst_36 = arith.constant dense<0.000000e+00> : vector<2x8x8xf32>
    %90 = tpu.matmul %88, %78, %cst_36 {dimension_numbers = #tpu.dot_dimension_numbers<[2], [1], [1], [2], [0, 0, 0, 1, 1, 2], [0], [0]>} : vector<2x8x8xf32>, vector<2x8x8xf32>, vector<2x8x8xf32> -> vector<2x8x8xf32>
    %91 = vector.shape_cast %90 : vector<2x8x8xf32> to vector<16x8xf32>
    %c0_37 = arith.constant 0 : index
    %c24 = arith.constant 24 : index
    %92 = vector.load %arg10[%c0_37, %c24] : memref<16x32xf32, #tpu.memory_space<vmem>>, vector<16x8xf32>
    tpu.vector_store %arg10[%c0_37, %c24], %91 {strides = array<i32>} : memref<16x32xf32, #tpu.memory_space<vmem>>, vector<16x8xf32>,
    %c0_38 = arith.constant 0 : index
    %c0_39 = arith.constant 0 : index
    %93 = vector.load %arg10[%c0_38, %c0_39] : memref<16x32xf32, #tpu.memory_space<vmem>>, vector<16x32xf32>
    %c0_40 = arith.constant 0 : index
    %c0_41 = arith.constant 0 : index
    %94 = vector.load %arg7[%c0_40, %c0_41] : memref<32x32xf32, #tpu.memory_space<vmem>>, vector<32x32xf32>
    %cst_42 = arith.constant dense<0.000000e+00> : vector<16x32xf32>
    %95 = tpu.matmul %93, %94, %cst_42 {dimension_numbers = #tpu.dot_dimension_numbers<[1], [0], [0], [1], [0, 0, 1, 1], [], []>} : vector<16x32xf32>, vector<32x32xf32>, vector<16x32xf32> -> vector<16x32xf32>
    %96 = vector.shape_cast %95 : vector<16x32xf32> to vector<2x8x32xf32>
    %c0_43 = arith.constant 0 : index
    %c0_44 = arith.constant 0 : index
    %c0_45 = arith.constant 0 : index
    %97 = vector.load %arg8[%c0_43, %c0_44, %c0_45] : memref<2x8x32xf32, #tpu.memory_space<vmem>>, vector<2x8x32xf32>
    tpu.vector_store %arg8[%c0_43, %c0_44, %c0_45], %96 {strides = array<i32>} : memref<2x8x32xf32, #tpu.memory_space<vmem>>, vector<2x8x32xf32>,
    %cst_46 = arith.constant 2.500000e-01 : f32
    %98 = vector.broadcast %cst_46 : f32 to vector<2x8x8xf32>
    %99 = arith.mulf %89, %98 : vector<2x8x8xf32>
    %c0_47 = arith.constant 0 : index
    %c0_48 = arith.constant 0 : index
    %c0_49 = arith.constant 0 : index
    %100 = vector.load %arg9[%c0_47, %c0_48, %c0_49] : memref<2x8x8xf32, #tpu.memory_space<vmem>>, vector<2x8x8xf32>
    tpu.vector_store %arg9[%c0_47, %c0_48, %c0_49], %99 {strides = array<i32>} : memref<2x8x8xf32, #tpu.memory_space<vmem>>, vector<2x8x8xf32>,
    return
  }
  func.func @transform_0(%arg0: i32) -> (i32, i32, i32) {
    %c0_i32 = arith.constant 0 : i32
    %c0_i32_0 = arith.constant 0 : i32
    %c0_i32_1 = arith.constant 0 : i32
    return %arg0, %c0_i32, %c0_i32_0 : i32, i32, i32
  }
  func.func @transform_1(%arg0: i32) -> (i32, i32, i32) {
    %c0_i32 = arith.constant 0 : i32
    %c0_i32_0 = arith.constant 0 : i32
    %c0_i32_1 = arith.constant 0 : i32
    return %arg0, %c0_i32, %c0_i32_0 : i32, i32, i32
  }
  func.func @transform_2(%arg0: i32) -> (i32, i32, i32) {
    %c0_i32 = arith.constant 0 : i32
    %c0_i32_0 = arith.constant 0 : i32
    %c0_i32_1 = arith.constant 0 : i32
    return %arg0, %c0_i32, %c0_i32_0 : i32, i32, i32
  }
  func.func @transform_3(%arg0: i32) -> (i32, i32) {
    %c0_i32 = arith.constant 0 : i32
    %c0_i32_0 = arith.constant 0 : i32
    %c0_i32_1 = arith.constant 0 : i32
    return %c0_i32, %c0_i32_0 : i32, i32
  }
  func.func @transform_4(%arg0: i32) -> (i32, i32) {
    %c0_i32 = arith.constant 0 : i32
    %c0_i32_0 = arith.constant 0 : i32
    %c0_i32_1 = arith.constant 0 : i32
    return %c0_i32, %c0_i32_0 : i32, i32
  }
  func.func @transform_5(%arg0: i32) -> (i32, i32) {
    %c0_i32 = arith.constant 0 : i32
    %c0_i32_0 = arith.constant 0 : i32
    %c0_i32_1 = arith.constant 0 : i32
    return %c0_i32, %c0_i32_0 : i32, i32
  }
  func.func @transform_6(%arg0: i32) -> (i32, i32) {
    %c0_i32 = arith.constant 0 : i32
    %c0_i32_0 = arith.constant 0 : i32
    %c0_i32_1 = arith.constant 0 : i32
    return %c0_i32, %c0_i32_0 : i32, i32
  }
  func.func @transform_7(%arg0: i32) -> (i32, i32, i32) {
    %c0_i32 = arith.constant 0 : i32
    %c0_i32_0 = arith.constant 0 : i32
    %c0_i32_1 = arith.constant 0 : i32
    return %arg0, %c0_i32, %c0_i32_0 : i32, i32, i32
  }
  func.func @transform_8(%arg0: i32) -> (i32, i32, i32) {
    %c0_i32 = arith.constant 0 : i32
    %c0_i32_0 = arith.constant 0 : i32
    %c0_i32_1 = arith.constant 0 : i32
    return %arg0, %c0_i32, %c0_i32_0 : i32, i32, i32
  }
}

</mosaic_0001>

<llo_original>
// kernel: tpu_custom_call.1
$region0: #{tpu_custom_call.1}
  #allocation0 [shape = 'u32[]', space=smem, size = 0x4, offset = 0x4, fixed_abs, tag = 'smem constant byte address 0x4 - core index']
  #allocation1 [shape = 'u32[144,128]{1,0:T(1,128)}', space=vmem, size = 0x12000, scoped, tag = 'internal scratch']
  #allocation2 [shape = 'f32[16,32]{1,0:T(8,128)}', space=vmem, size = 0x2000, scoped, tag = 'scratch operand']
  %s0 = inlined_call_operand.hbm [shape: f32[2,8,32], index: 0, kind: input, shape index: {}]
  %s1 = inlined_call_operand.hbm [shape: f32[2,8,32], index: 1, kind: input, shape index: {}]
  %s2 = inlined_call_operand.hbm [shape: f32[2,8,32], index: 2, kind: input, shape index: {}]
  %s3 = inlined_call_operand.hbm [shape: f32[32,32], index: 3, kind: input, shape index: {}]
  %s4 = inlined_call_operand.hbm [shape: f32[32,32], index: 4, kind: input, shape index: {}]
  %s5 = inlined_call_operand.hbm [shape: f32[32,32], index: 5, kind: input, shape index: {}]
  %s6 = inlined_call_operand.hbm [shape: f32[32,32], index: 6, kind: input, shape index: {}]
  %s7 = inlined_call_operand.hbm [shape: f32[2,8,32], index: 7, kind: output, shape index: {0}]
  %s8 = inlined_call_operand.hbm [shape: f32[2,8,8], index: 8, kind: output, shape index: {1}]
  %9 = xla_tuple %s7, %s8
  %s10 = sld [smem:[#allocation0]]
  $region74: #{tpu_custom_call.1} parent=0
    _
  %s12 = ssub.s32 1, %s10
  %s13 = scalar_select 0, %s12, %s10
  $region1: #{tpu_custom_call.1} parent=0
    #allocation3 [shape = 'u8[8192]{0}', space=vmem, size = 0x2000, scoped, tag = 'input window, operand 0, single buffered']
    #allocation4 [shape = 's32[1]{0}', space=sflag, size = 0x4, scoped, tag = 'scoped memory for tpu_custom_call.1']
    #allocation5 [shape = 's32[1]{0}', space=sflag, size = 0x4, scoped, tag = 'scoped memory for tpu_custom_call.1']
    #allocation6 [shape = 'u8[8192]{0}', space=vmem, size = 0x2000, scoped, tag = 'input window, operand 1, single buffered']
    #allocation7 [shape = 's32[1]{0}', space=sflag, size = 0x4, scoped, tag = 'scoped memory for tpu_custom_call.1']
    #allocation8 [shape = 'u8[8192]{0}', space=vmem, size = 0x2000, scoped, tag = 'input window, operand 2, single buffered']
    #allocation9 [shape = 'u8[16384]{0}', space=vmem, size = 0x4000, scoped, tag = 'input window, operand 3, single buffered']
    #allocation10 [shape = 's32[1]{0}', space=sflag, size = 0x4, scoped, tag = 'scoped memory for tpu_custom_call.1']
    #allocation11 [shape = 'u8[16384]{0}', space=vmem, size = 0x4000, scoped, tag = 'input window, operand 4, single buffered']
    #allocation12 [shape = 'u8[16384]{0}', space=vmem, size = 0x4000, scoped, tag = 'input window, operand 5, single buffered']
    #allocation13 [shape = 's32[1]{0}', space=sflag, size = 0x4, scoped, tag = 'scoped memory for tpu_custom_call.1']
    #allocation14 [shape = 'u8[16384]{0}', space=vmem, size = 0x4000, scoped, tag = 'input window, operand 6, single buffered']
    #allocation15 [shape = 'u8[8192]{0}', space=vmem, size = 0x2000, scoped, tag = 'output window, operand 0, single buffered']
    #allocation16 [shape = 'u8[8192]{0}', space=vmem, size = 0x2000, scoped, tag = 'output window, operand 1, single buffered']
    #allocation17 [shape = 's32[1]{0}', space=sflag, size = 0x4, scoped, tag = 'scoped memory for tpu_custom_call.1']
    %14 = vsyncpa [#allocation4], 0
    %15 = vsyncpa [#allocation7], 0
    %16 = vsyncpa [#allocation10], 0
    %17 = vsyncpa [#allocation13], 0
    %18 = vsyncpa [#allocation5], 0
    %19 = vsyncpa [#allocation17], 0
    // Predicated region
    $region2: #{tpu_custom_call.1} parent=1 // pred_check
      _
    $region3: #{tpu_custom_call.1} parent=1 // pred_check_branch
      %21 = sbr.rel (0) target = $region5
    $region4: #{tpu_custom_call.1} parent=1 // pred_region
      %s23 = ssub.s32 256, 256
      %24 = vsyncadd [#allocation4], %s23
      %s25 = sshll.u32 [#allocation3], 4
      %s26 = int_to_ptr.vmem [resolvable:$true] %s25
      %31 = dma.hbm_to_vmem [thread:$0]  %s0, 256, %s26, [#allocation4], 128, 128, 8
    $region5: #{tpu_custom_call.1} parent=1 // pred_fallthru
      _
    // Predicated region
    $region6: #{tpu_custom_call.1} parent=1 // pred_check
      _
    $region7: #{tpu_custom_call.1} parent=1 // pred_check_branch
      %33 = sbr.rel (0) target = $region9
    $region8: #{tpu_custom_call.1} parent=1 // pred_region
      %s35 = ssub.s32 256, 256
      %36 = vsyncadd [#allocation7], %s35
      %s37 = sshll.u32 [#allocation6], 4
      %s38 = int_to_ptr.vmem [resolvable:$true] %s37
      %43 = dma.hbm_to_vmem [thread:$0]  %s1, 256, %s38, [#allocation7], 128, 128, 8
    $region9: #{tpu_custom_call.1} parent=1 // pred_fallthru
      _
    // Predicated region
    $region10: #{tpu_custom_call.1} parent=1 // pred_check
      _
    $region11: #{tpu_custom_call.1} parent=1 // pred_check_branch
      %45 = sbr.rel (0) target = $region13
    $region12: #{tpu_custom_call.1} parent=1 // pred_region
      %s47 = ssub.s32 256, 256
      %48 = vsyncadd [#allocation7], %s47
      %s49 = sshll.u32 [#allocation8], 4
      %s50 = int_to_ptr.vmem [resolvable:$true] %s49
      %55 = dma.hbm_to_vmem [thread:$0]  %s2, 256, %s50, [#allocation7], 128, 128, 8
    $region13: #{tpu_custom_call.1} parent=1 // pred_fallthru
      _
    // Predicated region
    $region14: #{tpu_custom_call.1} parent=1 // pred_check
      _
    $region15: #{tpu_custom_call.1} parent=1 // pred_check_branch
      %57 = sbr.rel (0) target = $region17
    $region16: #{tpu_custom_call.1} parent=1 // pred_region
      %s59 = ssub.s32 512, 512
      %60 = vsyncadd [#allocation10], %s59
      %s61 = sshll.u32 [#allocation9], 4
      %s62 = int_to_ptr.vmem [resolvable:$true] %s61
      %67 = dma.hbm_to_vmem [thread:$0]  %s3, 512, %s62, [#allocation10], 128, 128, 8
    $region17: #{tpu_custom_call.1} parent=1 // pred_fallthru
      _
    // Predicated region
    $region18: #{tpu_custom_call.1} parent=1 // pred_check
      _
    $region19: #{tpu_custom_call.1} parent=1 // pred_check_branch
      %69 = sbr.rel (0) target = $region21
    $region20: #{tpu_custom_call.1} parent=1 // pred_region
      %s71 = ssub.s32 512, 512
      %72 = vsyncadd [#allocation10], %s71
      %s73 = sshll.u32 [#allocation11], 4
      %s74 = int_to_ptr.vmem [resolvable:$true] %s73
      %79 = dma.hbm_to_vmem [thread:$0]  %s4, 512, %s74, [#allocation10], 128, 128, 8
    $region21: #{tpu_custom_call.1} parent=1 // pred_fallthru
      _
    // Predicated region
    $region22: #{tpu_custom_call.1} parent=1 // pred_check
      _
    $region23: #{tpu_custom_call.1} parent=1 // pred_check_branch
      %81 = sbr.rel (0) target = $region25
    $region24: #{tpu_custom_call.1} parent=1 // pred_region
      %s83 = ssub.s32 512, 512
      %84 = vsyncadd [#allocation13], %s83
      %s85 = sshll.u32 [#allocation12], 4
      %s86 = int_to_ptr.vmem [resolvable:$true] %s85
      %91 = dma.hbm_to_vmem [thread:$0]  %s5, 512, %s86, [#allocation13], 128, 128, 8
    $region25: #{tpu_custom_call.1} parent=1 // pred_fallthru
      _
    // Predicated region
    $region26: #{tpu_custom_call.1} parent=1 // pred_check
      _
    $region27: #{tpu_custom_call.1} parent=1 // pred_check_branch
      %93 = sbr.rel (0) target = $region29
    $region28: #{tpu_custom_call.1} parent=1 // pred_region
      %s95 = ssub.s32 512, 512
      %96 = vsyncadd [#allocation13], %s95
      %s97 = sshll.u32 [#allocation14], 4
      %s98 = int_to_ptr.vmem [resolvable:$true] %s97
      %103 = dma.hbm_to_vmem [thread:$0]  %s6, 512, %s98, [#allocation13], 128, 128, 8
    $region29: #{tpu_custom_call.1} parent=1 // pred_fallthru
      _
    // Predicated region
    $region30: #{tpu_custom_call.1} parent=1 // pred_check
      _
    $region31: #{tpu_custom_call.1} parent=1 // pred_check_branch
      %105 = sbr.rel (0) target = $region33
    $region32: #{tpu_custom_call.1} parent=1 // pred_region
      %106 = dma.done [#allocation4], 256
    $region33: #{tpu_custom_call.1} parent=1 // pred_fallthru
      _
    // Predicated region
    $region34: #{tpu_custom_call.1} parent=1 // pred_check
      _
    $region35: #{tpu_custom_call.1} parent=1 // pred_check_branch
      %108 = sbr.rel (0) target = $region37
    $region36: #{tpu_custom_call.1} parent=1 // pred_region
      %109 = dma.done [#allocation7], 256
    $region37: #{tpu_custom_call.1} parent=1 // pred_fallthru
      _
    // Predicated region
    $region38: #{tpu_custom_call.1} parent=1 // pred_check
      _
    $region39: #{tpu_custom_call.1} parent=1 // pred_check_branch
      %111 = sbr.rel (0) target = $region41
    $region40: #{tpu_custom_call.1} parent=1 // pred_region
      %112 = dma.done [#allocation7], 256
    $region41: #{tpu_custom_call.1} parent=1 // pred_fallthru
      _
    // Predicated region
    $region42: #{tpu_custom_call.1} parent=1 // pred_check
      _
    $region43: #{tpu_custom_call.1} parent=1 // pred_check_branch
      %114 = sbr.rel (0) target = $region45
    $region44: #{tpu_custom_call.1} parent=1 // pred_region
      %115 = dma.done [#allocation10], 512
    $region45: #{tpu_custom_call.1} parent=1 // pred_fallthru
      _
    // Predicated region
    $region46: #{tpu_custom_call.1} parent=1 // pred_check
      _
    $region47: #{tpu_custom_call.1} parent=1 // pred_check_branch
      %117 = sbr.rel (0) target = $region49
    $region48: #{tpu_custom_call.1} parent=1 // pred_region
      %118 = dma.done [#allocation10], 512
    $region49: #{tpu_custom_call.1} parent=1 // pred_fallthru
      _
    // Predicated region
    $region50: #{tpu_custom_call.1} parent=1 // pred_check
      _
    $region51: #{tpu_custom_call.1} parent=1 // pred_check_branch
      %120 = sbr.rel (0) target = $region53
    $region52: #{tpu_custom_call.1} parent=1 // pred_region
      %121 = dma.done [#allocation13], 512
    $region53: #{tpu_custom_call.1} parent=1 // pred_fallthru
      _
    // Predicated region
    $region54: #{tpu_custom_call.1} parent=1 // pred_check
      _
    $region55: #{tpu_custom_call.1} parent=1 // pred_check_branch
      %123 = sbr.rel (0) target = $region57
    $region56: #{tpu_custom_call.1} parent=1 // pred_region
      %124 = dma.done [#allocation13], 512
    $region57: #{tpu_custom_call.1} parent=1 // pred_fallthru
      _
    %v125 = vld [vmem:[#allocation3] sm:$0xff]
    %v126 = vld [vmem:[#allocation3 + $0x8] sm:$0xff]
    %v127 = vld [vmem:[#allocation6] sm:$0xff]
    %v128 = vld [vmem:[#allocation6 + $0x8] sm:$0xff]
    %v129 = vld [vmem:[#allocation8] sm:$0xff]
    %v130 = vld [vmem:[#allocation8 + $0x8] sm:$0xff]
    %v131 = vld [vmem:[#allocation9] sm:$0xff]
    %v132 = vld [vmem:[#allocation9 + $0x8] sm:$0xff]
    %v133 = vld [vmem:[#allocation9 + $0x10] sm:$0xff]
    %v134 = vld [vmem:[#allocation9 + $0x18] sm:$0xff]
    %vm135 = vcmask 261120
    %v137 = vsel %vm135, %v125, 0
    %v140 = vsel %vm135, %v126, 0
    %142 = vmatprep.subr.mxu0 0.0
    %143 = vmatpush1.msra.mxu0 %v131
    %144 = vmatprep.subr.mxu0 0.0
    %145 = vmatpush1.msra.mxu0 %v132
    %146 = vmatprep.subr.mxu0 0.0
    %147 = vmatpush1.msra.mxu0 %v133
    %148 = vmatprep.subr.mxu0 0.0
    %149 = vmatpush1.msra.mxu0 %v134
    %150 = vmatprep.subr.mxu0 0.0
    %151 = vmatpush1.msra.mxu0 0.0
    %152 = vmatprep.subr.mxu0 0.0
    %153 = vmatpush1.msra.mxu0 0.0
    %154 = vmatprep.subr.mxu0 0.0
    %155 = vmatpush1.msra.mxu0 0.0
    %156 = vmatprep.subr.mxu0 0.0
    %157 = vmatpush1.msra.mxu0 0.0
    %158 = vmatprep.subr.mxu0 0.0
    %159 = vmatpush1.msra.mxu0 0.0
    %160 = vmatprep.subr.mxu0 0.0
    %161 = vmatpush1.msra.mxu0 0.0
    %162 = vmatprep.subr.mxu0 0.0
    %163 = vmatpush1.msra.mxu0 0.0
    %164 = vmatprep.subr.mxu0 0.0
    %165 = vmatpush1.msra.mxu0 0.0
    %166 = vmatprep.subr.mxu0 0.0
    %167 = vmatpush1.msra.mxu0 0.0
    %168 = vmatprep.subr.mxu0 0.0
    %169 = vmatpush1.msra.mxu0 0.0
    %170 = vmatprep.subr.mxu0 0.0
    %171 = vmatpush1.msra.mxu0 0.0
    %172 = vmatprep.subr.mxu0 0.0
    %173 = vmatpush1.msra.mxu0 0.0
    %174 = vmatprep.subr.mxu0 0.0
    %175 = vmatpush1.msra.mxu0 0.0
    %176 = vmatprep.subr.mxu0 0.0
    %177 = vmatpush1.msra.mxu0 0.0
    %178 = vmatprep.subr.mxu0 0.0
    %179 = vmatpush1.msra.mxu0 0.0
    %180 = vmatprep.subr.mxu0 0.0
    %181 = vmatpush1.msra.mxu0 0.0
    %182 = vmatprep.subr.mxu0 0.0
    %183 = vmatpush1.msra.mxu0 0.0
    %184 = vmatprep.subr.mxu0 0.0
    %185 = vmatpush1.msra.mxu0 0.0
    %186 = vmatprep.subr.mxu0 0.0
    %187 = vmatpush1.msra.mxu0 0.0
    %188 = vmatprep.subr.mxu0 0.0
    %189 = vmatpush1.msra.mxu0 0.0
    %190 = vmatprep.subr.mxu0 0.0
    %191 = vmatpush1.msra.mxu0 0.0
    %192 = vmatprep.subr.mxu0 0.0
    %193 = vmatpush1.msra.mxu0 0.0
    %194 = vmatprep.subr.mxu0 0.0
    %195 = vmatpush1.msra.mxu0 0.0
    %196 = vmatprep.subr.mxu0 0.0
    %197 = vmatpush1.msra.mxu0 0.0
    %198 = vmatprep.subr.mxu0 0.0
    %199 = vmatpush1.msra.mxu0 0.0
    %200 = vmatprep.subr.mxu0 0.0
    %201 = vmatpush1.msra.mxu0 0.0
    %202 = vmatprep.subr.mxu0 0.0
    %203 = vmatpush1.msra.mxu0 0.0
    %204 = vmatprep.subr.mxu0 0.0
    %205 = vmatpush1.msra.mxu0 0.0
    %206 = vmatprep.mubr.f32.mxu0 0.0
    %207 = vmatmul.mubr.f32.gmra.mrb[0].mxu0 %v137
    %v208 = vpop.f32.mrb[0].mxu0
    %v209 = vadd.f32 0.0, %v208
    %v210 = vpop.f32.mrb[0].mxu0
    %211 = vmatprep.mubr.f32.mxu0 0.0
    %212 = vmatmul.mubr.f32.gmra.mrb[0].mxu0 %v140
    %v213 = vpop.f32.mrb[0].mxu0
    %v214 = vadd.f32 0.0, %v213
    %v215 = vpop.f32.mrb[0].mxu0
    %216 = vdwg.mxu0
    %v217 = vld [vmem:[#allocation11] sm:$0xff]
    %v218 = vld [vmem:[#allocation11 + $0x8] sm:$0xff]
    %v219 = vld [vmem:[#allocation11 + $0x10] sm:$0xff]
    %v220 = vld [vmem:[#allocation11 + $0x18] sm:$0xff]
    %v222 = vsel %vm135, %v127, 0
    %v225 = vsel %vm135, %v128, 0
    %227 = vmatprep.subr.mxu0 0.0
    %228 = vmatpush1.msra.mxu0 %v217
    %229 = vmatprep.subr.mxu0 0.0
    %230 = vmatpush1.msra.mxu0 %v218
    %231 = vmatprep.subr.mxu0 0.0
    %232 = vmatpush1.msra.mxu0 %v219
    %233 = vmatprep.subr.mxu0 0.0
    %234 = vmatpush1.msra.mxu0 %v220
    %235 = vmatprep.subr.mxu0 0.0
    %236 = vmatpush1.msra.mxu0 0.0
    %237 = vmatprep.subr.mxu0 0.0
    %238 = vmatpush1.msra.mxu0 0.0
    %239 = vmatprep.subr.mxu0 0.0
    %240 = vmatpush1.msra.mxu0 0.0
    %241 = vmatprep.subr.mxu0 0.0
    %242 = vmatpush1.msra.mxu0 0.0
    %243 = vmatprep.subr.mxu0 0.0
    %244 = vmatpush1.msra.mxu0 0.0
    %245 = vmatprep.subr.mxu0 0.0
    %246 = vmatpush1.msra.mxu0 0.0
    %247 = vmatprep.subr.mxu0 0.0
    %248 = vmatpush1.msra.mxu0 0.0
    %249 = vmatprep.subr.mxu0 0.0
    %250 = vmatpush1.msra.mxu0 0.0
    %251 = vmatprep.subr.mxu0 0.0
    %252 = vmatpush1.msra.mxu0 0.0
    %253 = vmatprep.subr.mxu0 0.0
    %254 = vmatpush1.msra.mxu0 0.0
    %255 = vmatprep.subr.mxu0 0.0
    %256 = vmatpush1.msra.mxu0 0.0
    %257 = vmatprep.subr.mxu0 0.0
    %258 = vmatpush1.msra.mxu0 0.0
    %259 = vmatprep.subr.mxu0 0.0
    %260 = vmatpush1.msra.mxu0 0.0
    %261 = vmatprep.subr.mxu0 0.0
    %262 = vmatpush1.msra.mxu0 0.0
    %263 = vmatprep.subr.mxu0 0.0
    %264 = vmatpush1.msra.mxu0 0.0
    %265 = vmatprep.subr.mxu0 0.0
    %266 = vmatpush1.msra.mxu0 0.0
    %267 = vmatprep.subr.mxu0 0.0
    %268 = vmatpush1.msra.mxu0 0.0
    %269 = vmatprep.subr.mxu0 0.0
    %270 = vmatpush1.msra.mxu0 0.0
    %271 = vmatprep.subr.mxu0 0.0
    %272 = vmatpush1.msra.mxu0 0.0
    %273 = vmatprep.subr.mxu0 0.0
    %274 = vmatpush1.msra.mxu0 0.0
    %275 = vmatprep.subr.mxu0 0.0
    %276 = vmatpush1.msra.mxu0 0.0
    %277 = vmatprep.subr.mxu0 0.0
    %278 = vmatpush1.msra.mxu0 0.0
    %279 = vmatprep.subr.mxu0 0.0
    %280 = vmatpush1.msra.mxu0 0.0
    %281 = vmatprep.subr.mxu0 0.0
    %282 = vmatpush1.msra.mxu0 0.0
    %283 = vmatprep.subr.mxu0 0.0
    %284 = vmatpush1.msra.mxu0 0.0
    %285 = vmatprep.subr.mxu0 0.0
    %286 = vmatpush1.msra.mxu0 0.0
    %287 = vmatprep.subr.mxu0 0.0
    %288 = vmatpush1.msra.mxu0 0.0
    %289 = vmatprep.subr.mxu0 0.0
    %290 = vmatpush1.msra.mxu0 0.0
    %291 = vmatprep.mubr.f32.mxu0 0.0
    %292 = vmatmul.mubr.f32.gmra.mrb[0].mxu0 %v222
    %v293 = vpop.f32.mrb[0].mxu0
    %v294 = vadd.f32 0.0, %v293
    %v295 = vpop.f32.mrb[0].mxu0
    %296 = vmatprep.mubr.f32.mxu0 0.0
    %297 = vmatmul.mubr.f32.gmra.mrb[0].mxu0 %v225
    %v298 = vpop.f32.mrb[0].mxu0
    %v299 = vadd.f32 0.0, %v298
    %v300 = vpop.f32.mrb[0].mxu0
    %301 = vdwg.mxu0
    %v302 = vld [vmem:[#allocation12] sm:$0xff]
    %v303 = vld [vmem:[#allocation12 + $0x8] sm:$0xff]
    %v304 = vld [vmem:[#allocation12 + $0x10] sm:$0xff]
    %v305 = vld [vmem:[#allocation12 + $0x18] sm:$0xff]
    %v307 = vsel %vm135, %v129, 0
    %v310 = vsel %vm135, %v130, 0
    %312 = vmatprep.subr.mxu0 0.0
    %313 = vmatpush1.msra.mxu0 %v302
    %314 = vmatprep.subr.mxu0 0.0
    %315 = vmatpush1.msra.mxu0 %v303
    %316 = vmatprep.subr.mxu0 0.0
    %317 = vmatpush1.msra.mxu0 %v304
    %318 = vmatprep.subr.mxu0 0.0
    %319 = vmatpush1.msra.mxu0 %v305
    %320 = vmatprep.subr.mxu0 0.0
    %321 = vmatpush1.msra.mxu0 0.0
    %322 = vmatprep.subr.mxu0 0.0
    %323 = vmatpush1.msra.mxu0 0.0
    %324 = vmatprep.subr.mxu0 0.0
    %325 = vmatpush1.msra.mxu0 0.0
    %326 = vmatprep.subr.mxu0 0.0
    %327 = vmatpush1.msra.mxu0 0.0
    %328 = vmatprep.subr.mxu0 0.0
    %329 = vmatpush1.msra.mxu0 0.0
    %330 = vmatprep.subr.mxu0 0.0
    %331 = vmatpush1.msra.mxu0 0.0
    %332 = vmatprep.subr.mxu0 0.0
    %333 = vmatpush1.msra.mxu0 0.0
    %334 = vmatprep.subr.mxu0 0.0
    %335 = vmatpush1.msra.mxu0 0.0
    %336 = vmatprep.subr.mxu0 0.0
    %337 = vmatpush1.msra.mxu0 0.0
    %338 = vmatprep.subr.mxu0 0.0
    %339 = vmatpush1.msra.mxu0 0.0
    %340 = vmatprep.subr.mxu0 0.0
    %341 = vmatpush1.msra.mxu0 0.0
    %342 = vmatprep.subr.mxu0 0.0
    %343 = vmatpush1.msra.mxu0 0.0
    %344 = vmatprep.subr.mxu0 0.0
    %345 = vmatpush1.msra.mxu0 0.0
    %346 = vmatprep.subr.mxu0 0.0
    %347 = vmatpush1.msra.mxu0 0.0
    %348 = vmatprep.subr.mxu0 0.0
    %349 = vmatpush1.msra.mxu0 0.0
    %350 = vmatprep.subr.mxu0 0.0
    %351 = vmatpush1.msra.mxu0 0.0
    %352 = vmatprep.subr.mxu0 0.0
    %353 = vmatpush1.msra.mxu0 0.0
    %354 = vmatprep.subr.mxu0 0.0
    %355 = vmatpush1.msra.mxu0 0.0
    %356 = vmatprep.subr.mxu0 0.0
    %357 = vmatpush1.msra.mxu0 0.0
    %358 = vmatprep.subr.mxu0 0.0
    %359 = vmatpush1.msra.mxu0 0.0
    %360 = vmatprep.subr.mxu0 0.0
    %361 = vmatpush1.msra.mxu0 0.0
    %362 = vmatprep.subr.mxu0 0.0
    %363 = vmatpush1.msra.mxu0 0.0
    %364 = vmatprep.subr.mxu0 0.0
    %365 = vmatpush1.msra.mxu0 0.0
    %366 = vmatprep.subr.mxu0 0.0
    %367 = vmatpush1.msra.mxu0 0.0
    %368 = vmatprep.subr.mxu0 0.0
    %369 = vmatpush1.msra.mxu0 0.0
    %370 = vmatprep.subr.mxu0 0.0
    %371 = vmatpush1.msra.mxu0 0.0
    %372 = vmatprep.subr.mxu0 0.0
    %373 = vmatpush1.msra.mxu0 0.0
    %374 = vmatprep.subr.mxu0 0.0
    %375 = vmatpush1.msra.mxu0 0.0
    %376 = vmatprep.mubr.f32.mxu0 0.0
    %377 = vmatmul.mubr.f32.gmra.mrb[0].mxu0 %v307
    %v378 = vpop.f32.mrb[0].mxu0
    %v379 = vadd.f32 0.0, %v378
    %v380 = vpop.f32.mrb[0].mxu0
    %381 = vmatprep.mubr.f32.mxu0 0.0
    %382 = vmatmul.mubr.f32.gmra.mrb[0].mxu0 %v310
    %v383 = vpop.f32.mrb[0].mxu0
    %v384 = vadd.f32 0.0, %v383
    %v385 = vpop.f32.mrb[0].mxu0
    %386 = vdwg.mxu0
    %vm387 = vcmask 64512
    %v389 = vsel %vm387, %v209, 0
    %v392 = vsel %vm387, %v294, 0
    %394 = vmatprep.subr.mxu0 0.0
    %395 = vmatpush1.xpose.msra.mxu0 %v392
    %396 = vmatprep.subr.mxu0 0.0
    %397 = vmatpush1.xpose.msra.mxu0 0.0
    %398 = vmatprep.subr.mxu0 0.0
    %399 = vmatpush1.xpose.msra.mxu0 0.0
    %400 = vmatprep.subr.mxu0 0.0
    %401 = vmatpush1.xpose.msra.mxu0 0.0
    %402 = vmatprep.subr.mxu0 0.0
    %403 = vmatpush1.xpose.msra.mxu0 0.0
    %404 = vmatprep.subr.mxu0 0.0
    %405 = vmatpush1.xpose.msra.mxu0 0.0
    %406 = vmatprep.subr.mxu0 0.0
    %407 = vmatpush1.xpose.msra.mxu0 0.0
    %408 = vmatprep.subr.mxu0 0.0
    %409 = vmatpush1.xpose.msra.mxu0 0.0
    %410 = vmatprep.subr.mxu0 0.0
    %411 = vmatpush1.xpose.msra.mxu0 0.0
    %412 = vmatprep.subr.mxu0 0.0
    %413 = vmatpush1.xpose.msra.mxu0 0.0
    %414 = vmatprep.subr.mxu0 0.0
    %415 = vmatpush1.xpose.msra.mxu0 0.0
    %416 = vmatprep.subr.mxu0 0.0
    %417 = vmatpush1.xpose.msra.mxu0 0.0
    %418 = vmatprep.subr.mxu0 0.0
    %419 = vmatpush1.xpose.msra.mxu0 0.0
    %420 = vmatprep.subr.mxu0 0.0
    %421 = vmatpush1.xpose.msra.mxu0 0.0
    %422 = vmatprep.subr.mxu0 0.0
    %423 = vmatpush1.xpose.msra.mxu0 0.0
    %424 = vmatprep.subr.mxu0 0.0
    %425 = vmatpush1.xpose.msra.mxu0 0.0
    %426 = vmatprep.subr.mxu0 0.0
    %427 = vmatpush1.xpose.msra.mxu0 0.0
    %428 = vmatprep.subr.mxu0 0.0
    %429 = vmatpush1.xpose.msra.mxu0 0.0
    %430 = vmatprep.subr.mxu0 0.0
    %431 = vmatpush1.xpose.msra.mxu0 0.0
    %432 = vmatprep.subr.mxu0 0.0
    %433 = vmatpush1.xpose.msra.mxu0 0.0
    %434 = vmatprep.subr.mxu0 0.0
    %435 = vmatpush1.xpose.msra.mxu0 0.0
    %436 = vmatprep.subr.mxu0 0.0
    %437 = vmatpush1.xpose.msra.mxu0 0.0
    %438 = vmatprep.subr.mxu0 0.0
    %439 = vmatpush1.xpose.msra.mxu0 0.0
    %440 = vmatprep.subr.mxu0 0.0
    %441 = vmatpush1.xpose.msra.mxu0 0.0
    %442 = vmatprep.subr.mxu0 0.0
    %443 = vmatpush1.xpose.msra.mxu0 0.0
    %444 = vmatprep.subr.mxu0 0.0
    %445 = vmatpush1.xpose.msra.mxu0 0.0
    %446 = vmatprep.subr.mxu0 0.0
    %447 = vmatpush1.xpose.msra.mxu0 0.0
    %448 = vmatprep.subr.mxu0 0.0
    %449 = vmatpush1.xpose.msra.mxu0 0.0
    %450 = vmatprep.subr.mxu0 0.0
    %451 = vmatpush1.xpose.msra.mxu0 0.0
    %452 = vmatprep.subr.mxu0 0.0
    %453 = vmatpush1.xpose.msra.mxu0 0.0
    %454 = vmatprep.subr.mxu0 0.0
    %455 = vmatpush1.xpose.msra.mxu0 0.0
    %456 = vmatprep.subr.mxu0 0.0
    %457 = vmatpush1.xpose.msra.mxu0 0.0
    %458 = vmatprep.mubr.f32.mxu0 0.0
    %459 = vmatmul.mubr.f32.gmra.mrb[0].mxu0 %v389
    %v460 = vpop.f32.mrb[0].mxu0
    %v461 = vadd.f32 0.0, %v460
    %v462 = vpop.f32.mrb[0].mxu0
    %463 = vdwg.mxu0
    %v465 = vsel %vm387, %v214, 0
    %v468 = vsel %vm387, %v299, 0
    %470 = vmatprep.subr.mxu0 0.0
    %471 = vmatpush1.xpose.msra.mxu0 %v468
    %472 = vmatprep.subr.mxu0 0.0
    %473 = vmatpush1.xpose.msra.mxu0 0.0
    %474 = vmatprep.subr.mxu0 0.0
    %475 = vmatpush1.xpose.msra.mxu0 0.0
    %476 = vmatprep.subr.mxu0 0.0
    %477 = vmatpush1.xpose.msra.mxu0 0.0
    %478 = vmatprep.subr.mxu0 0.0
    %479 = vmatpush1.xpose.msra.mxu0 0.0
    %480 = vmatprep.subr.mxu0 0.0
    %481 = vmatpush1.xpose.msra.mxu0 0.0
    %482 = vmatprep.subr.mxu0 0.0
    %483 = vmatpush1.xpose.msra.mxu0 0.0
    %484 = vmatprep.subr.mxu0 0.0
    %485 = vmatpush1.xpose.msra.mxu0 0.0
    %486 = vmatprep.subr.mxu0 0.0
    %487 = vmatpush1.xpose.msra.mxu0 0.0
    %488 = vmatprep.subr.mxu0 0.0
    %489 = vmatpush1.xpose.msra.mxu0 0.0
    %490 = vmatprep.subr.mxu0 0.0
    %491 = vmatpush1.xpose.msra.mxu0 0.0
    %492 = vmatprep.subr.mxu0 0.0
    %493 = vmatpush1.xpose.msra.mxu0 0.0
    %494 = vmatprep.subr.mxu0 0.0
    %495 = vmatpush1.xpose.msra.mxu0 0.0
    %496 = vmatprep.subr.mxu0 0.0
    %497 = vmatpush1.xpose.msra.mxu0 0.0
    %498 = vmatprep.subr.mxu0 0.0
    %499 = vmatpush1.xpose.msra.mxu0 0.0
    %500 = vmatprep.subr.mxu0 0.0
    %501 = vmatpush1.xpose.msra.mxu0 0.0
    %502 = vmatprep.subr.mxu0 0.0
    %503 = vmatpush1.xpose.msra.mxu0 0.0
    %504 = vmatprep.subr.mxu0 0.0
    %505 = vmatpush1.xpose.msra.mxu0 0.0
    %506 = vmatprep.subr.mxu0 0.0
    %507 = vmatpush1.xpose.msra.mxu0 0.0
    %508 = vmatprep.subr.mxu0 0.0
    %509 = vmatpush1.xpose.msra.mxu0 0.0
    %510 = vmatprep.subr.mxu0 0.0
    %511 = vmatpush1.xpose.msra.mxu0 0.0
    %512 = vmatprep.subr.mxu0 0.0
    %513 = vmatpush1.xpose.msra.mxu0 0.0
    %514 = vmatprep.subr.mxu0 0.0
    %515 = vmatpush1.xpose.msra.mxu0 0.0
    %516 = vmatprep.subr.mxu0 0.0
    %517 = vmatpush1.xpose.msra.mxu0 0.0
    %518 = vmatprep.subr.mxu0 0.0
    %519 = vmatpush1.xpose.msra.mxu0 0.0
    %520 = vmatprep.subr.mxu0 0.0
    %521 = vmatpush1.xpose.msra.mxu0 0.0
    %522 = vmatprep.subr.mxu0 0.0
    %523 = vmatpush1.xpose.msra.mxu0 0.0
    %524 = vmatprep.subr.mxu0 0.0
    %525 = vmatpush1.xpose.msra.mxu0 0.0
    %526 = vmatprep.subr.mxu0 0.0
    %527 = vmatpush1.xpose.msra.mxu0 0.0
    %528 = vmatprep.subr.mxu0 0.0
    %529 = vmatpush1.xpose.msra.mxu0 0.0
    %530 = vmatprep.subr.mxu0 0.0
    %531 = vmatpush1.xpose.msra.mxu0 0.0
    %532 = vmatprep.subr.mxu0 0.0
    %533 = vmatpush1.xpose.msra.mxu0 0.0
    %534 = vmatprep.mubr.f32.mxu0 0.0
    %535 = vmatmul.mubr.f32.gmra.mrb[0].mxu0 %v465
    %v536 = vpop.f32.mrb[0].mxu0
    %v537 = vadd.f32 0.0, %v536
    %v538 = vpop.f32.mrb[0].mxu0
    %539 = vdwg.mxu0
    %v540 = vsel %vm387, %v461, -inf
    %541 = vmax.xlane.f32.xlu0 %v540
    %v542 = vpop.xlane.xlu0 %541
    %v543 = vsel %vm387, %v537, -inf
    %544 = vmax.xlane.f32.xlu0 %v543
    %v545 = vpop.xlane.xlu0 %544
    %v546 = vsub.f32 %v461, %v542
    %v547 = vsub.f32 %v537, %v545
    %v548 = vmul.f32 %v546, 1.442695
    %v549 = vpow.pop %v548
    %v550 = vmul.f32 %v547, 1.442695
    %v551 = vpow.pop %v550
    %v552 = vsel %vm387, %v549, 0.0
    %553 = vadd.xlane.f32.xlu0 %v552
    %v554 = vpop.xlane.xlu0 %553
    %v555 = vsel %vm387, %v551, 0.0
    %556 = vadd.xlane.f32.xlu0 %v555
    %v557 = vpop.xlane.xlu0 %556
    %v558 = vrcp.pop %v554
    %v559 = vmul.f32 %v549, %v558
    %v560 = vrcp.pop %v557
    %v561 = vmul.f32 %v551, %v560
    %v562 = vadd.f32 %v559, 0.0
    %v563 = vadd.f32 %v561, 0.0
    %v565 = vsel %vm387, %v559, 0
    %567 = vmatprep.subr.mxu0 0.0
    %568 = vmatpush1.msra.mxu0 %v379
    %569 = vmatprep.subr.mxu0 0.0
    %570 = vmatpush1.msra.mxu0 0.0
    %571 = vmatprep.subr.mxu0 0.0
    %572 = vmatpush1.msra.mxu0 0.0
    %573 = vmatprep.subr.mxu0 0.0
    %574 = vmatpush1.msra.mxu0 0.0
    %575 = vmatprep.subr.mxu0 0.0
    %576 = vmatpush1.msra.mxu0 0.0
    %577 = vmatprep.subr.mxu0 0.0
    %578 = vmatpush1.msra.mxu0 0.0
    %579 = vmatprep.subr.mxu0 0.0
    %580 = vmatpush1.msra.mxu0 0.0
    %581 = vmatprep.subr.mxu0 0.0
    %582 = vmatpush1.msra.mxu0 0.0
    %583 = vmatprep.subr.mxu0 0.0
    %584 = vmatpush1.msra.mxu0 0.0
    %585 = vmatprep.subr.mxu0 0.0
    %586 = vmatpush1.msra.mxu0 0.0
    %587 = vmatprep.subr.mxu0 0.0
    %588 = vmatpush1.msra.mxu0 0.0
    %589 = vmatprep.subr.mxu0 0.0
    %590 = vmatpush1.msra.mxu0 0.0
    %591 = vmatprep.subr.mxu0 0.0
    %592 = vmatpush1.msra.mxu0 0.0
    %593 = vmatprep.subr.mxu0 0.0
    %594 = vmatpush1.msra.mxu0 0.0
    %595 = vmatprep.subr.mxu0 0.0
    %596 = vmatpush1.msra.mxu0 0.0
    %597 = vmatprep.subr.mxu0 0.0
    %598 = vmatpush1.msra.mxu0 0.0
    %599 = vmatprep.subr.mxu0 0.0
    %600 = vmatpush1.msra.mxu0 0.0
    %601 = vmatprep.subr.mxu0 0.0
    %602 = vmatpush1.msra.mxu0 0.0
    %603 = vmatprep.subr.mxu0 0.0
    %604 = vmatpush1.msra.mxu0 0.0
    %605 = vmatprep.subr.mxu0 0.0
    %606 = vmatpush1.msra.mxu0 0.0
    %607 = vmatprep.subr.mxu0 0.0
    %608 = vmatpush1.msra.mxu0 0.0
    %609 = vmatprep.subr.mxu0 0.0
    %610 = vmatpush1.msra.mxu0 0.0
    %611 = vmatprep.subr.mxu0 0.0
    %612 = vmatpush1.msra.mxu0 0.0
    %613 = vmatprep.subr.mxu0 0.0
    %614 = vmatpush1.msra.mxu0 0.0
    %615 = vmatprep.subr.mxu0 0.0
    %616 = vmatpush1.msra.mxu0 0.0
    %617 = vmatprep.subr.mxu0 0.0
    %618 = vmatpush1.msra.mxu0 0.0
    %619 = vmatprep.subr.mxu0 0.0
    %620 = vmatpush1.msra.mxu0 0.0
    %621 = vmatprep.subr.mxu0 0.0
    %622 = vmatpush1.msra.mxu0 0.0
    %623 = vmatprep.subr.mxu0 0.0
    %624 = vmatpush1.msra.mxu0 0.0
    %625 = vmatprep.subr.mxu0 0.0
    %626 = vmatpush1.msra.mxu0 0.0
    %627 = vmatprep.subr.mxu0 0.0
    %628 = vmatpush1.msra.mxu0 0.0
    %629 = vmatprep.subr.mxu0 0.0
    %630 = vmatpush1.msra.mxu0 0.0
    %631 = vmatprep.mubr.f32.mxu0 0.0
    %632 = vmatmul.mubr.f32.gmra.mrb[0].mxu0 %v565
    %v633 = vpop.f32.mrb[0].mxu0
    %v634 = vadd.f32 0.0, %v633
    %v635 = vpop.f32.mrb[0].mxu0
    %636 = vdwg.mxu0
    %v638 = vsel %vm387, %v561, 0
    %640 = vmatprep.subr.mxu0 0.0
    %641 = vmatpush1.msra.mxu0 %v384
    %642 = vmatprep.subr.mxu0 0.0
    %643 = vmatpush1.msra.mxu0 0.0
    %644 = vmatprep.subr.mxu0 0.0
    %645 = vmatpush1.msra.mxu0 0.0
    %646 = vmatprep.subr.mxu0 0.0
    %647 = vmatpush1.msra.mxu0 0.0
    %648 = vmatprep.subr.mxu0 0.0
    %649 = vmatpush1.msra.mxu0 0.0
    %650 = vmatprep.subr.mxu0 0.0
    %651 = vmatpush1.msra.mxu0 0.0
    %652 = vmatprep.subr.mxu0 0.0
    %653 = vmatpush1.msra.mxu0 0.0
    %654 = vmatprep.subr.mxu0 0.0
    %655 = vmatpush1.msra.mxu0 0.0
    %656 = vmatprep.subr.mxu0 0.0
    %657 = vmatpush1.msra.mxu0 0.0
    %658 = vmatprep.subr.mxu0 0.0
    %659 = vmatpush1.msra.mxu0 0.0
    %660 = vmatprep.subr.mxu0 0.0
    %661 = vmatpush1.msra.mxu0 0.0
    %662 = vmatprep.subr.mxu0 0.0
    %663 = vmatpush1.msra.mxu0 0.0
    %664 = vmatprep.subr.mxu0 0.0
    %665 = vmatpush1.msra.mxu0 0.0
    %666 = vmatprep.subr.mxu0 0.0
    %667 = vmatpush1.msra.mxu0 0.0
    %668 = vmatprep.subr.mxu0 0.0
    %669 = vmatpush1.msra.mxu0 0.0
    %670 = vmatprep.subr.mxu0 0.0
    %671 = vmatpush1.msra.mxu0 0.0
    %672 = vmatprep.subr.mxu0 0.0
    %673 = vmatpush1.msra.mxu0 0.0
    %674 = vmatprep.subr.mxu0 0.0
    %675 = vmatpush1.msra.mxu0 0.0
    %676 = vmatprep.subr.mxu0 0.0
    %677 = vmatpush1.msra.mxu0 0.0
    %678 = vmatprep.subr.mxu0 0.0
    %679 = vmatpush1.msra.mxu0 0.0
    %680 = vmatprep.subr.mxu0 0.0
    %681 = vmatpush1.msra.mxu0 0.0
    %682 = vmatprep.subr.mxu0 0.0
    %683 = vmatpush1.msra.mxu0 0.0
    %684 = vmatprep.subr.mxu0 0.0
    %685 = vmatpush1.msra.mxu0 0.0
    %686 = vmatprep.subr.mxu0 0.0
    %687 = vmatpush1.msra.mxu0 0.0
    %688 = vmatprep.subr.mxu0 0.0
    %689 = vmatpush1.msra.mxu0 0.0
    %690 = vmatprep.subr.mxu0 0.0
    %691 = vmatpush1.msra.mxu0 0.0
    %692 = vmatprep.subr.mxu0 0.0
    %693 = vmatpush1.msra.mxu0 0.0
    %694 = vmatprep.subr.mxu0 0.0
    %695 = vmatpush1.msra.mxu0 0.0
    %696 = vmatprep.subr.mxu0 0.0
    %697 = vmatpush1.msra.mxu0 0.0
    %698 = vmatprep.subr.mxu0 0.0
    %699 = vmatpush1.msra.mxu0 0.0
    %700 = vmatprep.subr.mxu0 0.0
    %701 = vmatpush1.msra.mxu0 0.0
    %702 = vmatprep.subr.mxu0 0.0
    %703 = vmatpush1.msra.mxu0 0.0
    %704 = vmatprep.mubr.f32.mxu0 0.0
    %705 = vmatmul.mubr.f32.gmra.mrb[0].mxu0 %v638
    %v706 = vpop.f32.mrb[0].mxu0
    %v707 = vadd.f32 0.0, %v706
    %v708 = vpop.f32.mrb[0].mxu0
    %709 = vdwg.mxu0
    %710 = vst.msk [vmem:[#allocation2] sm:$0xff] %vm387, %v634
    %711 = vst.msk [vmem:[#allocation2 + $0x8] sm:$0xff] %vm387, %v707
    %712 = vrot.lane.b32.xlu0 %v209, 120
    %v713 = vpop.permute.xlu0 %712
    %714 = vrot.lane.b32.xlu0 %v294, 120
    %v715 = vpop.permute.xlu0 %714
    %v716 = vsel %vm387, %v713, 0
    %v718 = vsel %vm387, %v715, 0
    %720 = vmatprep.subr.mxu0 0.0
    %721 = vmatpush1.xpose.msra.mxu0 %v718
    %722 = vmatprep.subr.mxu0 0.0
    %723 = vmatpush1.xpose.msra.mxu0 0.0
    %724 = vmatprep.subr.mxu0 0.0
    %725 = vmatpush1.xpose.msra.mxu0 0.0
    %726 = vmatprep.subr.mxu0 0.0
    %727 = vmatpush1.xpose.msra.mxu0 0.0
    %728 = vmatprep.subr.mxu0 0.0
    %729 = vmatpush1.xpose.msra.mxu0 0.0
    %730 = vmatprep.subr.mxu0 0.0
    %731 = vmatpush1.xpose.msra.mxu0 0.0
    %732 = vmatprep.subr.mxu0 0.0
    %733 = vmatpush1.xpose.msra.mxu0 0.0
    %734 = vmatprep.subr.mxu0 0.0
    %735 = vmatpush1.xpose.msra.mxu0 0.0
    %736 = vmatprep.subr.mxu0 0.0
    %737 = vmatpush1.xpose.msra.mxu0 0.0
    %738 = vmatprep.subr.mxu0 0.0
    %739 = vmatpush1.xpose.msra.mxu0 0.0
    %740 = vmatprep.subr.mxu0 0.0
    %741 = vmatpush1.xpose.msra.mxu0 0.0
    %742 = vmatprep.subr.mxu0 0.0
    %743 = vmatpush1.xpose.msra.mxu0 0.0
    %744 = vmatprep.subr.mxu0 0.0
    %745 = vmatpush1.xpose.msra.mxu0 0.0
    %746 = vmatprep.subr.mxu0 0.0
    %747 = vmatpush1.xpose.msra.mxu0 0.0
    %748 = vmatprep.subr.mxu0 0.0
    %749 = vmatpush1.xpose.msra.mxu0 0.0
    %750 = vmatprep.subr.mxu0 0.0
    %751 = vmatpush1.xpose.msra.mxu0 0.0
    %752 = vmatprep.subr.mxu0 0.0
    %753 = vmatpush1.xpose.msra.mxu0 0.0
    %754 = vmatprep.subr.mxu0 0.0
    %755 = vmatpush1.xpose.msra.mxu0 0.0
    %756 = vmatprep.subr.mxu0 0.0
    %757 = vmatpush1.xpose.msra.mxu0 0.0
    %758 = vmatprep.subr.mxu0 0.0
    %759 = vmatpush1.xpose.msra.mxu0 0.0
    %760 = vmatprep.subr.mxu0 0.0
    %761 = vmatpush1.xpose.msra.mxu0 0.0
    %762 = vmatprep.subr.mxu0 0.0
    %763 = vmatpush1.xpose.msra.mxu0 0.0
    %764 = vmatprep.subr.mxu0 0.0
    %765 = vmatpush1.xpose.msra.mxu0 0.0
    %766 = vmatprep.subr.mxu0 0.0
    %767 = vmatpush1.xpose.msra.mxu0 0.0
    %768 = vmatprep.subr.mxu0 0.0
    %769 = vmatpush1.xpose.msra.mxu0 0.0
    %770 = vmatprep.subr.mxu0 0.0
    %771 = vmatpush1.xpose.msra.mxu0 0.0
    %772 = vmatprep.subr.mxu0 0.0
    %773 = vmatpush1.xpose.msra.mxu0 0.0
    %774 = vmatprep.subr.mxu0 0.0
    %775 = vmatpush1.xpose.msra.mxu0 0.0
    %776 = vmatprep.subr.mxu0 0.0
    %777 = vmatpush1.xpose.msra.mxu0 0.0
    %778 = vmatprep.subr.mxu0 0.0
    %779 = vmatpush1.xpose.msra.mxu0 0.0
    %780 = vmatprep.subr.mxu0 0.0
    %781 = vmatpush1.xpose.msra.mxu0 0.0
    %782 = vmatprep.subr.mxu0 0.0
    %783 = vmatpush1.xpose.msra.mxu0 0.0
    %784 = vmatprep.mubr.f32.mxu0 0.0
    %785 = vmatmul.mubr.f32.gmra.mrb[0].mxu0 %v716
    %v786 = vpop.f32.mrb[0].mxu0
    %v787 = vadd.f32 0.0, %v786
    %v788 = vpop.f32.mrb[0].mxu0
    %789 = vdwg.mxu0
    %790 = vrot.lane.b32.xlu0 %v214, 120
    %v791 = vpop.permute.xlu0 %790
    %792 = vrot.lane.b32.xlu0 %v299, 120
    %v793 = vpop.permute.xlu0 %792
    %v794 = vsel %vm387, %v791, 0
    %v796 = vsel %vm387, %v793, 0
    %798 = vmatprep.subr.mxu0 0.0
    %799 = vmatpush1.xpose.msra.mxu0 %v796
    %800 = vmatprep.subr.mxu0 0.0
    %801 = vmatpush1.xpose.msra.mxu0 0.0
    %802 = vmatprep.subr.mxu0 0.0
    %803 = vmatpush1.xpose.msra.mxu0 0.0
    %804 = vmatprep.subr.mxu0 0.0
    %805 = vmatpush1.xpose.msra.mxu0 0.0
    %806 = vmatprep.subr.mxu0 0.0
    %807 = vmatpush1.xpose.msra.mxu0 0.0
    %808 = vmatprep.subr.mxu0 0.0
    %809 = vmatpush1.xpose.msra.mxu0 0.0
    %810 = vmatprep.subr.mxu0 0.0
    %811 = vmatpush1.xpose.msra.mxu0 0.0
    %812 = vmatprep.subr.mxu0 0.0
    %813 = vmatpush1.xpose.msra.mxu0 0.0
    %814 = vmatprep.subr.mxu0 0.0
    %815 = vmatpush1.xpose.msra.mxu0 0.0
    %816 = vmatprep.subr.mxu0 0.0
    %817 = vmatpush1.xpose.msra.mxu0 0.0
    %818 = vmatprep.subr.mxu0 0.0
    %819 = vmatpush1.xpose.msra.mxu0 0.0
    %820 = vmatprep.subr.mxu0 0.0
    %821 = vmatpush1.xpose.msra.mxu0 0.0
    %822 = vmatprep.subr.mxu0 0.0
    %823 = vmatpush1.xpose.msra.mxu0 0.0
    %824 = vmatprep.subr.mxu0 0.0
    %825 = vmatpush1.xpose.msra.mxu0 0.0
    %826 = vmatprep.subr.mxu0 0.0
    %827 = vmatpush1.xpose.msra.mxu0 0.0
    %828 = vmatprep.subr.mxu0 0.0
    %829 = vmatpush1.xpose.msra.mxu0 0.0
    %830 = vmatprep.subr.mxu0 0.0
    %831 = vmatpush1.xpose.msra.mxu0 0.0
    %832 = vmatprep.subr.mxu0 0.0
    %833 = vmatpush1.xpose.msra.mxu0 0.0
    %834 = vmatprep.subr.mxu0 0.0
    %835 = vmatpush1.xpose.msra.mxu0 0.0
    %836 = vmatprep.subr.mxu0 0.0
    %837 = vmatpush1.xpose.msra.mxu0 0.0
    %838 = vmatprep.subr.mxu0 0.0
    %839 = vmatpush1.xpose.msra.mxu0 0.0
    %840 = vmatprep.subr.mxu0 0.0
    %841 = vmatpush1.xpose.msra.mxu0 0.0
    %842 = vmatprep.subr.mxu0 0.0
    %843 = vmatpush1.xpose.msra.mxu0 0.0
    %844 = vmatprep.subr.mxu0 0.0
    %845 = vmatpush1.xpose.msra.mxu0 0.0
    %846 = vmatprep.subr.mxu0 0.0
    %847 = vmatpush1.xpose.msra.mxu0 0.0
    %848 = vmatprep.subr.mxu0 0.0
    %849 = vmatpush1.xpose.msra.mxu0 0.0
    %850 = vmatprep.subr.mxu0 0.0
    %851 = vmatpush1.xpose.msra.mxu0 0.0
    %852 = vmatprep.subr.mxu0 0.0
    %853 = vmatpush1.xpose.msra.mxu0 0.0
    %854 = vmatprep.subr.mxu0 0.0
    %855 = vmatpush1.xpose.msra.mxu0 0.0
    %856 = vmatprep.subr.mxu0 0.0
    %857 = vmatpush1.xpose.msra.mxu0 0.0
    %858 = vmatprep.subr.mxu0 0.0
    %859 = vmatpush1.xpose.msra.mxu0 0.0
    %860 = vmatprep.subr.mxu0 0.0
    %861 = vmatpush1.xpose.msra.mxu0 0.0
    %862 = vmatprep.mubr.f32.mxu0 0.0
    %863 = vmatmul.mubr.f32.gmra.mrb[0].mxu0 %v794
    %v864 = vpop.f32.mrb[0].mxu0
    %v865 = vadd.f32 0.0, %v864
    %v866 = vpop.f32.mrb[0].mxu0
    %867 = vdwg.mxu0
    %v868 = vsel %vm387, %v787, -inf
    %869 = vmax.xlane.f32.xlu0 %v868
    %v870 = vpop.xlane.xlu0 %869
    %v871 = vsel %vm387, %v865, -inf
    %872 = vmax.xlane.f32.xlu0 %v871
    %v873 = vpop.xlane.xlu0 %872
    %v874 = vsub.f32 %v787, %v870
    %v875 = vsub.f32 %v865, %v873
    %v876 = vmul.f32 %v874, 1.442695
    %v877 = vpow.pop %v876
    %v878 = vmul.f32 %v875, 1.442695
    %v879 = vpow.pop %v878
    %v880 = vsel %vm387, %v877, 0.0
    %881 = vadd.xlane.f32.xlu0 %v880
    %v882 = vpop.xlane.xlu0 %881
    %v883 = vsel %vm387, %v879, 0.0
    %884 = vadd.xlane.f32.xlu0 %v883
    %v885 = vpop.xlane.xlu0 %884
    %v886 = vrcp.pop %v882
    %v887 = vmul.f32 %v877, %v886
    %v888 = vrcp.pop %v885
    %v889 = vmul.f32 %v879, %v888
    %v890 = vadd.f32 %v562, %v887
    %v891 = vadd.f32 %v563, %v889
    %893 = vrot.lane.b32.xlu0 %v379, 120
    %v894 = vpop.permute.xlu0 %893
    %v897 = vsel %vm387, %v887, 0
    %899 = vmatprep.subr.mxu0 0.0
    %900 = vmatpush1.msra.mxu0 %v894
    %901 = vmatprep.subr.mxu0 0.0
    %902 = vmatpush1.msra.mxu0 0.0
    %903 = vmatprep.subr.mxu0 0.0
    %904 = vmatpush1.msra.mxu0 0.0
    %905 = vmatprep.subr.mxu0 0.0
    %906 = vmatpush1.msra.mxu0 0.0
    %907 = vmatprep.subr.mxu0 0.0
    %908 = vmatpush1.msra.mxu0 0.0
    %909 = vmatprep.subr.mxu0 0.0
    %910 = vmatpush1.msra.mxu0 0.0
    %911 = vmatprep.subr.mxu0 0.0
    %912 = vmatpush1.msra.mxu0 0.0
    %913 = vmatprep.subr.mxu0 0.0
    %914 = vmatpush1.msra.mxu0 0.0
    %915 = vmatprep.subr.mxu0 0.0
    %916 = vmatpush1.msra.mxu0 0.0
    %917 = vmatprep.subr.mxu0 0.0
    %918 = vmatpush1.msra.mxu0 0.0
    %919 = vmatprep.subr.mxu0 0.0
    %920 = vmatpush1.msra.mxu0 0.0
    %921 = vmatprep.subr.mxu0 0.0
    %922 = vmatpush1.msra.mxu0 0.0
    %923 = vmatprep.subr.mxu0 0.0
    %924 = vmatpush1.msra.mxu0 0.0
    %925 = vmatprep.subr.mxu0 0.0
    %926 = vmatpush1.msra.mxu0 0.0
    %927 = vmatprep.subr.mxu0 0.0
    %928 = vmatpush1.msra.mxu0 0.0
    %929 = vmatprep.subr.mxu0 0.0
    %930 = vmatpush1.msra.mxu0 0.0
    %931 = vmatprep.subr.mxu0 0.0
    %932 = vmatpush1.msra.mxu0 0.0
    %933 = vmatprep.subr.mxu0 0.0
    %934 = vmatpush1.msra.mxu0 0.0
    %935 = vmatprep.subr.mxu0 0.0
    %936 = vmatpush1.msra.mxu0 0.0
    %937 = vmatprep.subr.mxu0 0.0
    %938 = vmatpush1.msra.mxu0 0.0
    %939 = vmatprep.subr.mxu0 0.0
    %940 = vmatpush1.msra.mxu0 0.0
    %941 = vmatprep.subr.mxu0 0.0
    %942 = vmatpush1.msra.mxu0 0.0
    %943 = vmatprep.subr.mxu0 0.0
    %944 = vmatpush1.msra.mxu0 0.0
    %945 = vmatprep.subr.mxu0 0.0
    %946 = vmatpush1.msra.mxu0 0.0
    %947 = vmatprep.subr.mxu0 0.0
    %948 = vmatpush1.msra.mxu0 0.0
    %949 = vmatprep.subr.mxu0 0.0
    %950 = vmatpush1.msra.mxu0 0.0
    %951 = vmatprep.subr.mxu0 0.0
    %952 = vmatpush1.msra.mxu0 0.0
    %953 = vmatprep.subr.mxu0 0.0
    %954 = vmatpush1.msra.mxu0 0.0
    %955 = vmatprep.subr.mxu0 0.0
    %956 = vmatpush1.msra.mxu0 0.0
    %957 = vmatprep.subr.mxu0 0.0
    %958 = vmatpush1.msra.mxu0 0.0
    %959 = vmatprep.subr.mxu0 0.0
    %960 = vmatpush1.msra.mxu0 0.0
    %961 = vmatprep.subr.mxu0 0.0
    %962 = vmatpush1.msra.mxu0 0.0
    %963 = vmatprep.mubr.f32.mxu0 0.0
    %964 = vmatmul.mubr.f32.gmra.mrb[0].mxu0 %v897
    %v965 = vpop.f32.mrb[0].mxu0
    %v966 = vadd.f32 0.0, %v965
    %v967 = vpop.f32.mrb[0].mxu0
    %968 = vdwg.mxu0
    %970 = vrot.lane.b32.xlu0 %v384, 120
    %v971 = vpop.permute.xlu0 %970
    %v974 = vsel %vm387, %v889, 0
    %976 = vmatprep.subr.mxu0 0.0
    %977 = vmatpush1.msra.mxu0 %v971
    %978 = vmatprep.subr.mxu0 0.0
    %979 = vmatpush1.msra.mxu0 0.0
    %980 = vmatprep.subr.mxu0 0.0
    %981 = vmatpush1.msra.mxu0 0.0
    %982 = vmatprep.subr.mxu0 0.0
    %983 = vmatpush1.msra.mxu0 0.0
    %984 = vmatprep.subr.mxu0 0.0
    %985 = vmatpush1.msra.mxu0 0.0
    %986 = vmatprep.subr.mxu0 0.0
    %987 = vmatpush1.msra.mxu0 0.0
    %988 = vmatprep.subr.mxu0 0.0
    %989 = vmatpush1.msra.mxu0 0.0
    %990 = vmatprep.subr.mxu0 0.0
    %991 = vmatpush1.msra.mxu0 0.0
    %992 = vmatprep.subr.mxu0 0.0
    %993 = vmatpush1.msra.mxu0 0.0
    %994 = vmatprep.subr.mxu0 0.0
    %995 = vmatpush1.msra.mxu0 0.0
    %996 = vmatprep.subr.mxu0 0.0
    %997 = vmatpush1.msra.mxu0 0.0
    %998 = vmatprep.subr.mxu0 0.0
    %999 = vmatpush1.msra.mxu0 0.0
    %1000 = vmatprep.subr.mxu0 0.0
    %1001 = vmatpush1.msra.mxu0 0.0
    %1002 = vmatprep.subr.mxu0 0.0
    %1003 = vmatpush1.msra.mxu0 0.0
    %1004 = vmatprep.subr.mxu0 0.0
    %1005 = vmatpush1.msra.mxu0 0.0
    %1006 = vmatprep.subr.mxu0 0.0
    %1007 = vmatpush1.msra.mxu0 0.0
    %1008 = vmatprep.subr.mxu0 0.0
    %1009 = vmatpush1.msra.mxu0 0.0
    %1010 = vmatprep.subr.mxu0 0.0
    %1011 = vmatpush1.msra.mxu0 0.0
    %1012 = vmatprep.subr.mxu0 0.0
    %1013 = vmatpush1.msra.mxu0 0.0
    %1014 = vmatprep.subr.mxu0 0.0
    %1015 = vmatpush1.msra.mxu0 0.0
    %1016 = vmatprep.subr.mxu0 0.0
    %1017 = vmatpush1.msra.mxu0 0.0
    %1018 = vmatprep.subr.mxu0 0.0
    %1019 = vmatpush1.msra.mxu0 0.0
    %1020 = vmatprep.subr.mxu0 0.0
    %1021 = vmatpush1.msra.mxu0 0.0
    %1022 = vmatprep.subr.mxu0 0.0
    %1023 = vmatpush1.msra.mxu0 0.0
    %1024 = vmatprep.subr.mxu0 0.0
    %1025 = vmatpush1.msra.mxu0 0.0
    %1026 = vmatprep.subr.mxu0 0.0
    %1027 = vmatpush1.msra.mxu0 0.0
    %1028 = vmatprep.subr.mxu0 0.0
    %1029 = vmatpush1.msra.mxu0 0.0
    %1030 = vmatprep.subr.mxu0 0.0
    %1031 = vmatpush1.msra.mxu0 0.0
    %1032 = vmatprep.subr.mxu0 0.0
    %1033 = vmatpush1.msra.mxu0 0.0
    %1034 = vmatprep.subr.mxu0 0.0
    %1035 = vmatpush1.msra.mxu0 0.0
    %1036 = vmatprep.subr.mxu0 0.0
    %1037 = vmatpush1.msra.mxu0 0.0
    %1038 = vmatprep.subr.mxu0 0.0
    %1039 = vmatpush1.msra.mxu0 0.0
    %1040 = vmatprep.mubr.f32.mxu0 0.0
    %1041 = vmatmul.mubr.f32.gmra.mrb[0].mxu0 %v974
    %v1042 = vpop.f32.mrb[0].mxu0
    %v1043 = vadd.f32 0.0, %v1042
    %v1044 = vpop.f32.mrb[0].mxu0
    %1045 = vdwg.mxu0
    %1048 = vrot.lane.b32.xlu0 %v966, 8
    %v1049 = vpop.permute.xlu0 %1048
    %1050 = vrot.lane.b32.xlu0 %v1043, 8
    %v1051 = vpop.permute.xlu0 %1050
    %vm1054 = vcmask 130112
    %1055 = vst.msk [vmem:[#allocation2] sm:$0xff] %vm1054, %v1049
    %1056 = vst.msk [vmem:[#allocation2 + $0x8] sm:$0xff] %vm1054, %v1051
    %1057 = vrot.lane.b32.xlu0 %v209, 112
    %v1058 = vpop.permute.xlu0 %1057
    %1059 = vrot.lane.b32.xlu0 %v294, 112
    %v1060 = vpop.permute.xlu0 %1059
    %v1061 = vsel %vm387, %v1058, 0
    %v1063 = vsel %vm387, %v1060, 0
    %1065 = vmatprep.subr.mxu0 0.0
    %1066 = vmatpush1.xpose.msra.mxu0 %v1063
    %1067 = vmatprep.subr.mxu0 0.0
    %1068 = vmatpush1.xpose.msra.mxu0 0.0
    %1069 = vmatprep.subr.mxu0 0.0
    %1070 = vmatpush1.xpose.msra.mxu0 0.0
    %1071 = vmatprep.subr.mxu0 0.0
    %1072 = vmatpush1.xpose.msra.mxu0 0.0
    %1073 = vmatprep.subr.mxu0 0.0
    %1074 = vmatpush1.xpose.msra.mxu0 0.0
    %1075 = vmatprep.subr.mxu0 0.0
    %1076 = vmatpush1.xpose.msra.mxu0 0.0
    %1077 = vmatprep.subr.mxu0 0.0
    %1078 = vmatpush1.xpose.msra.mxu0 0.0
    %1079 = vmatprep.subr.mxu0 0.0
    %1080 = vmatpush1.xpose.msra.mxu0 0.0
    %1081 = vmatprep.subr.mxu0 0.0
    %1082 = vmatpush1.xpose.msra.mxu0 0.0
    %1083 = vmatprep.subr.mxu0 0.0
    %1084 = vmatpush1.xpose.msra.mxu0 0.0
    %1085 = vmatprep.subr.mxu0 0.0
    %1086 = vmatpush1.xpose.msra.mxu0 0.0
    %1087 = vmatprep.subr.mxu0 0.0
    %1088 = vmatpush1.xpose.msra.mxu0 0.0
    %1089 = vmatprep.subr.mxu0 0.0
    %1090 = vmatpush1.xpose.msra.mxu0 0.0
    %1091 = vmatprep.subr.mxu0 0.0
    %1092 = vmatpush1.xpose.msra.mxu0 0.0
    %1093 = vmatprep.subr.mxu0 0.0
    %1094 = vmatpush1.xpose.msra.mxu0 0.0
    %1095 = vmatprep.subr.mxu0 0.0
    %1096 = vmatpush1.xpose.msra.mxu0 0.0
    %1097 = vmatprep.subr.mxu0 0.0
    %1098 = vmatpush1.xpose.msra.mxu0 0.0
    %1099 = vmatprep.subr.mxu0 0.0
    %1100 = vmatpush1.xpose.msra.mxu0 0.0
    %1101 = vmatprep.subr.mxu0 0.0
    %1102 = vmatpush1.xpose.msra.mxu0 0.0
    %1103 = vmatprep.subr.mxu0 0.0
    %1104 = vmatpush1.xpose.msra.mxu0 0.0
    %1105 = vmatprep.subr.mxu0 0.0
    %1106 = vmatpush1.xpose.msra.mxu0 0.0
    %1107 = vmatprep.subr.mxu0 0.0
    %1108 = vmatpush1.xpose.msra.mxu0 0.0
    %1109 = vmatprep.subr.mxu0 0.0
    %1110 = vmatpush1.xpose.msra.mxu0 0.0
    %1111 = vmatprep.subr.mxu0 0.0
    %1112 = vmatpush1.xpose.msra.mxu0 0.0
    %1113 = vmatprep.subr.mxu0 0.0
    %1114 = vmatpush1.xpose.msra.mxu0 0.0
    %1115 = vmatprep.subr.mxu0 0.0
    %1116 = vmatpush1.xpose.msra.mxu0 0.0
    %1117 = vmatprep.subr.mxu0 0.0
    %1118 = vmatpush1.xpose.msra.mxu0 0.0
    %1119 = vmatprep.subr.mxu0 0.0
    %1120 = vmatpush1.xpose.msra.mxu0 0.0
    %1121 = vmatprep.subr.mxu0 0.0
    %1122 = vmatpush1.xpose.msra.mxu0 0.0
    %1123 = vmatprep.subr.mxu0 0.0
    %1124 = vmatpush1.xpose.msra.mxu0 0.0
    %1125 = vmatprep.subr.mxu0 0.0
    %1126 = vmatpush1.xpose.msra.mxu0 0.0
    %1127 = vmatprep.subr.mxu0 0.0
    %1128 = vmatpush1.xpose.msra.mxu0 0.0
    %1129 = vmatprep.mubr.f32.mxu0 0.0
    %1130 = vmatmul.mubr.f32.gmra.mrb[0].mxu0 %v1061
    %v1131 = vpop.f32.mrb[0].mxu0
    %v1132 = vadd.f32 0.0, %v1131
    %v1133 = vpop.f32.mrb[0].mxu0
    %1134 = vdwg.mxu0
    %1135 = vrot.lane.b32.xlu0 %v214, 112
    %v1136 = vpop.permute.xlu0 %1135
    %1137 = vrot.lane.b32.xlu0 %v299, 112
    %v1138 = vpop.permute.xlu0 %1137
    %v1139 = vsel %vm387, %v1136, 0
    %v1141 = vsel %vm387, %v1138, 0
    %1143 = vmatprep.subr.mxu0 0.0
    %1144 = vmatpush1.xpose.msra.mxu0 %v1141
    %1145 = vmatprep.subr.mxu0 0.0
    %1146 = vmatpush1.xpose.msra.mxu0 0.0
    %1147 = vmatprep.subr.mxu0 0.0
    %1148 = vmatpush1.xpose.msra.mxu0 0.0
    %1149 = vmatprep.subr.mxu0 0.0
    %1150 = vmatpush1.xpose.msra.mxu0 0.0
    %1151 = vmatprep.subr.mxu0 0.0
    %1152 = vmatpush1.xpose.msra.mxu0 0.0
    %1153 = vmatprep.subr.mxu0 0.0
    %1154 = vmatpush1.xpose.msra.mxu0 0.0
    %1155 = vmatprep.subr.mxu0 0.0
    %1156 = vmatpush1.xpose.msra.mxu0 0.0
    %1157 = vmatprep.subr.mxu0 0.0
    %1158 = vmatpush1.xpose.msra.mxu0 0.0
    %1159 = vmatprep.subr.mxu0 0.0
    %1160 = vmatpush1.xpose.msra.mxu0 0.0
    %1161 = vmatprep.subr.mxu0 0.0
    %1162 = vmatpush1.xpose.msra.mxu0 0.0
    %1163 = vmatprep.subr.mxu0 0.0
    %1164 = vmatpush1.xpose.msra.mxu0 0.0
    %1165 = vmatprep.subr.mxu0 0.0
    %1166 = vmatpush1.xpose.msra.mxu0 0.0
    %1167 = vmatprep.subr.mxu0 0.0
    %1168 = vmatpush1.xpose.msra.mxu0 0.0
    %1169 = vmatprep.subr.mxu0 0.0
    %1170 = vmatpush1.xpose.msra.mxu0 0.0
    %1171 = vmatprep.subr.mxu0 0.0
    %1172 = vmatpush1.xpose.msra.mxu0 0.0
    %1173 = vmatprep.subr.mxu0 0.0
    %1174 = vmatpush1.xpose.msra.mxu0 0.0
    %1175 = vmatprep.subr.mxu0 0.0
    %1176 = vmatpush1.xpose.msra.mxu0 0.0
    %1177 = vmatprep.subr.mxu0 0.0
    %1178 = vmatpush1.xpose.msra.mxu0 0.0
    %1179 = vmatprep.subr.mxu0 0.0
    %1180 = vmatpush1.xpose.msra.mxu0 0.0
    %1181 = vmatprep.subr.mxu0 0.0
    %1182 = vmatpush1.xpose.msra.mxu0 0.0
    %1183 = vmatprep.subr.mxu0 0.0
    %1184 = vmatpush1.xpose.msra.mxu0 0.0
    %1185 = vmatprep.subr.mxu0 0.0
    %1186 = vmatpush1.xpose.msra.mxu0 0.0
    %1187 = vmatprep.subr.mxu0 0.0
    %1188 = vmatpush1.xpose.msra.mxu0 0.0
    %1189 = vmatprep.subr.mxu0 0.0
    %1190 = vmatpush1.xpose.msra.mxu0 0.0
    %1191 = vmatprep.subr.mxu0 0.0
    %1192 = vmatpush1.xpose.msra.mxu0 0.0
    %1193 = vmatprep.subr.mxu0 0.0
    %1194 = vmatpush1.xpose.msra.mxu0 0.0
    %1195 = vmatprep.subr.mxu0 0.0
    %1196 = vmatpush1.xpose.msra.mxu0 0.0
    %1197 = vmatprep.subr.mxu0 0.0
    %1198 = vmatpush1.xpose.msra.mxu0 0.0
    %1199 = vmatprep.subr.mxu0 0.0
    %1200 = vmatpush1.xpose.msra.mxu0 0.0
    %1201 = vmatprep.subr.mxu0 0.0
    %1202 = vmatpush1.xpose.msra.mxu0 0.0
    %1203 = vmatprep.subr.mxu0 0.0
    %1204 = vmatpush1.xpose.msra.mxu0 0.0
    %1205 = vmatprep.subr.mxu0 0.0
    %1206 = vmatpush1.xpose.msra.mxu0 0.0
    %1207 = vmatprep.mubr.f32.mxu0 0.0
    %1208 = vmatmul.mubr.f32.gmra.mrb[0].mxu0 %v1139
    %v1209 = vpop.f32.mrb[0].mxu0
    %v1210 = vadd.f32 0.0, %v1209
    %v1211 = vpop.f32.mrb[0].mxu0
    %1212 = vdwg.mxu0
    %v1213 = vsel %vm387, %v1132, -inf
    %1214 = vmax.xlane.f32.xlu0 %v1213
    %v1215 = vpop.xlane.xlu0 %1214
    %v1216 = vsel %vm387, %v1210, -inf
    %1217 = vmax.xlane.f32.xlu0 %v1216
    %v1218 = vpop.xlane.xlu0 %1217
    %v1219 = vsub.f32 %v1132, %v1215
    %v1220 = vsub.f32 %v1210, %v1218
    %v1221 = vmul.f32 %v1219, 1.442695
    %v1222 = vpow.pop %v1221
    %v1223 = vmul.f32 %v1220, 1.442695
    %v1224 = vpow.pop %v1223
    %v1225 = vsel %vm387, %v1222, 0.0
    %1226 = vadd.xlane.f32.xlu0 %v1225
    %v1227 = vpop.xlane.xlu0 %1226
    %v1228 = vsel %vm387, %v1224, 0.0
    %1229 = vadd.xlane.f32.xlu0 %v1228
    %v1230 = vpop.xlane.xlu0 %1229
    %v1231 = vrcp.pop %v1227
    %v1232 = vmul.f32 %v1222, %v1231
    %v1233 = vrcp.pop %v1230
    %v1234 = vmul.f32 %v1224, %v1233
    %v1235 = vadd.f32 %v890, %v1232
    %v1236 = vadd.f32 %v891, %v1234
    %1237 = vrot.lane.b32.xlu0 %v379, 112
    %v1238 = vpop.permute.xlu0 %1237
    %v1241 = vsel %vm387, %v1232, 0
    %1243 = vmatprep.subr.mxu0 0.0
    %1244 = vmatpush1.msra.mxu0 %v1238
    %1245 = vmatprep.subr.mxu0 0.0
    %1246 = vmatpush1.msra.mxu0 0.0
    %1247 = vmatprep.subr.mxu0 0.0
    %1248 = vmatpush1.msra.mxu0 0.0
    %1249 = vmatprep.subr.mxu0 0.0
    %1250 = vmatpush1.msra.mxu0 0.0
    %1251 = vmatprep.subr.mxu0 0.0
    %1252 = vmatpush1.msra.mxu0 0.0
    %1253 = vmatprep.subr.mxu0 0.0
    %1254 = vmatpush1.msra.mxu0 0.0
    %1255 = vmatprep.subr.mxu0 0.0
    %1256 = vmatpush1.msra.mxu0 0.0
    %1257 = vmatprep.subr.mxu0 0.0
    %1258 = vmatpush1.msra.mxu0 0.0
    %1259 = vmatprep.subr.mxu0 0.0
    %1260 = vmatpush1.msra.mxu0 0.0
    %1261 = vmatprep.subr.mxu0 0.0
    %1262 = vmatpush1.msra.mxu0 0.0
    %1263 = vmatprep.subr.mxu0 0.0
    %1264 = vmatpush1.msra.mxu0 0.0
    %1265 = vmatprep.subr.mxu0 0.0
    %1266 = vmatpush1.msra.mxu0 0.0
    %1267 = vmatprep.subr.mxu0 0.0
    %1268 = vmatpush1.msra.mxu0 0.0
    %1269 = vmatprep.subr.mxu0 0.0
    %1270 = vmatpush1.msra.mxu0 0.0
    %1271 = vmatprep.subr.mxu0 0.0
    %1272 = vmatpush1.msra.mxu0 0.0
    %1273 = vmatprep.subr.mxu0 0.0
    %1274 = vmatpush1.msra.mxu0 0.0
    %1275 = vmatprep.subr.mxu0 0.0
    %1276 = vmatpush1.msra.mxu0 0.0
    %1277 = vmatprep.subr.mxu0 0.0
    %1278 = vmatpush1.msra.mxu0 0.0
    %1279 = vmatprep.subr.mxu0 0.0
    %1280 = vmatpush1.msra.mxu0 0.0
    %1281 = vmatprep.subr.mxu0 0.0
    %1282 = vmatpush1.msra.mxu0 0.0
    %1283 = vmatprep.subr.mxu0 0.0
    %1284 = vmatpush1.msra.mxu0 0.0
    %1285 = vmatprep.subr.mxu0 0.0
    %1286 = vmatpush1.msra.mxu0 0.0
    %1287 = vmatprep.subr.mxu0 0.0
    %1288 = vmatpush1.msra.mxu0 0.0
    %1289 = vmatprep.subr.mxu0 0.0
    %1290 = vmatpush1.msra.mxu0 0.0
    %1291 = vmatprep.subr.mxu0 0.0
    %1292 = vmatpush1.msra.mxu0 0.0
    %1293 = vmatprep.subr.mxu0 0.0
    %1294 = vmatpush1.msra.mxu0 0.0
    %1295 = vmatprep.subr.mxu0 0.0
    %1296 = vmatpush1.msra.mxu0 0.0
    %1297 = vmatprep.subr.mxu0 0.0
    %1298 = vmatpush1.msra.mxu0 0.0
    %1299 = vmatprep.subr.mxu0 0.0
    %1300 = vmatpush1.msra.mxu0 0.0
    %1301 = vmatprep.subr.mxu0 0.0
    %1302 = vmatpush1.msra.mxu0 0.0
    %1303 = vmatprep.subr.mxu0 0.0
    %1304 = vmatpush1.msra.mxu0 0.0
    %1305 = vmatprep.subr.mxu0 0.0
    %1306 = vmatpush1.msra.mxu0 0.0
    %1307 = vmatprep.mubr.f32.mxu0 0.0
    %1308 = vmatmul.mubr.f32.gmra.mrb[0].mxu0 %v1241
    %v1309 = vpop.f32.mrb[0].mxu0
    %v1310 = vadd.f32 0.0, %v1309
    %v1311 = vpop.f32.mrb[0].mxu0
    %1312 = vdwg.mxu0
    %1313 = vrot.lane.b32.xlu0 %v384, 112
    %v1314 = vpop.permute.xlu0 %1313
    %v1317 = vsel %vm387, %v1234, 0
    %1319 = vmatprep.subr.mxu0 0.0
    %1320 = vmatpush1.msra.mxu0 %v1314
    %1321 = vmatprep.subr.mxu0 0.0
    %1322 = vmatpush1.msra.mxu0 0.0
    %1323 = vmatprep.subr.mxu0 0.0
    %1324 = vmatpush1.msra.mxu0 0.0
    %1325 = vmatprep.subr.mxu0 0.0
    %1326 = vmatpush1.msra.mxu0 0.0
    %1327 = vmatprep.subr.mxu0 0.0
    %1328 = vmatpush1.msra.mxu0 0.0
    %1329 = vmatprep.subr.mxu0 0.0
    %1330 = vmatpush1.msra.mxu0 0.0
    %1331 = vmatprep.subr.mxu0 0.0
    %1332 = vmatpush1.msra.mxu0 0.0
    %1333 = vmatprep.subr.mxu0 0.0
    %1334 = vmatpush1.msra.mxu0 0.0
    %1335 = vmatprep.subr.mxu0 0.0
    %1336 = vmatpush1.msra.mxu0 0.0
    %1337 = vmatprep.subr.mxu0 0.0
    %1338 = vmatpush1.msra.mxu0 0.0
    %1339 = vmatprep.subr.mxu0 0.0
    %1340 = vmatpush1.msra.mxu0 0.0
    %1341 = vmatprep.subr.mxu0 0.0
    %1342 = vmatpush1.msra.mxu0 0.0
    %1343 = vmatprep.subr.mxu0 0.0
    %1344 = vmatpush1.msra.mxu0 0.0
    %1345 = vmatprep.subr.mxu0 0.0
    %1346 = vmatpush1.msra.mxu0 0.0
    %1347 = vmatprep.subr.mxu0 0.0
    %1348 = vmatpush1.msra.mxu0 0.0
    %1349 = vmatprep.subr.mxu0 0.0
    %1350 = vmatpush1.msra.mxu0 0.0
    %1351 = vmatprep.subr.mxu0 0.0
    %1352 = vmatpush1.msra.mxu0 0.0
    %1353 = vmatprep.subr.mxu0 0.0
    %1354 = vmatpush1.msra.mxu0 0.0
    %1355 = vmatprep.subr.mxu0 0.0
    %1356 = vmatpush1.msra.mxu0 0.0
    %1357 = vmatprep.subr.mxu0 0.0
    %1358 = vmatpush1.msra.mxu0 0.0
    %1359 = vmatprep.subr.mxu0 0.0
    %1360 = vmatpush1.msra.mxu0 0.0
    %1361 = vmatprep.subr.mxu0 0.0
    %1362 = vmatpush1.msra.mxu0 0.0
    %1363 = vmatprep.subr.mxu0 0.0
    %1364 = vmatpush1.msra.mxu0 0.0
    %1365 = vmatprep.subr.mxu0 0.0
    %1366 = vmatpush1.msra.mxu0 0.0
    %1367 = vmatprep.subr.mxu0 0.0
    %1368 = vmatpush1.msra.mxu0 0.0
    %1369 = vmatprep.subr.mxu0 0.0
    %1370 = vmatpush1.msra.mxu0 0.0
    %1371 = vmatprep.subr.mxu0 0.0
    %1372 = vmatpush1.msra.mxu0 0.0
    %1373 = vmatprep.subr.mxu0 0.0
    %1374 = vmatpush1.msra.mxu0 0.0
    %1375 = vmatprep.subr.mxu0 0.0
    %1376 = vmatpush1.msra.mxu0 0.0
    %1377 = vmatprep.subr.mxu0 0.0
    %1378 = vmatpush1.msra.mxu0 0.0
    %1379 = vmatprep.subr.mxu0 0.0
    %1380 = vmatpush1.msra.mxu0 0.0
    %1381 = vmatprep.subr.mxu0 0.0
    %1382 = vmatpush1.msra.mxu0 0.0
    %1383 = vmatprep.mubr.f32.mxu0 0.0
    %1384 = vmatmul.mubr.f32.gmra.mrb[0].mxu0 %v1317
    %v1385 = vpop.f32.mrb[0].mxu0
    %v1386 = vadd.f32 0.0, %v1385
    %v1387 = vpop.f32.mrb[0].mxu0
    %1388 = vdwg.mxu0
    %1391 = vrot.lane.b32.xlu0 %v1310, 16
    %v1392 = vpop.permute.xlu0 %1391
    %1393 = vrot.lane.b32.xlu0 %v1386, 16
    %v1394 = vpop.permute.xlu0 %1393
    %vm1397 = vcmask 195712
    %1398 = vst.msk [vmem:[#allocation2] sm:$0xff] %vm1397, %v1392
    %1399 = vst.msk [vmem:[#allocation2 + $0x8] sm:$0xff] %vm1397, %v1394
    %1400 = vrot.lane.b32.xlu0 %v209, 104
    %v1401 = vpop.permute.xlu0 %1400
    %1402 = vrot.lane.b32.xlu0 %v294, 104
    %v1403 = vpop.permute.xlu0 %1402
    %v1404 = vsel %vm387, %v1401, 0
    %v1406 = vsel %vm387, %v1403, 0
    %1408 = vmatprep.subr.mxu0 0.0
    %1409 = vmatpush1.xpose.msra.mxu0 %v1406
    %1410 = vmatprep.subr.mxu0 0.0
    %1411 = vmatpush1.xpose.msra.mxu0 0.0
    %1412 = vmatprep.subr.mxu0 0.0
    %1413 = vmatpush1.xpose.msra.mxu0 0.0
    %1414 = vmatprep.subr.mxu0 0.0
    %1415 = vmatpush1.xpose.msra.mxu0 0.0
    %1416 = vmatprep.subr.mxu0 0.0
    %1417 = vmatpush1.xpose.msra.mxu0 0.0
    %1418 = vmatprep.subr.mxu0 0.0
    %1419 = vmatpush1.xpose.msra.mxu0 0.0
    %1420 = vmatprep.subr.mxu0 0.0
    %1421 = vmatpush1.xpose.msra.mxu0 0.0
    %1422 = vmatprep.subr.mxu0 0.0
    %1423 = vmatpush1.xpose.msra.mxu0 0.0
    %1424 = vmatprep.subr.mxu0 0.0
    %1425 = vmatpush1.xpose.msra.mxu0 0.0
    %1426 = vmatprep.subr.mxu0 0.0
    %1427 = vmatpush1.xpose.msra.mxu0 0.0
    %1428 = vmatprep.subr.mxu0 0.0
    %1429 = vmatpush1.xpose.msra.mxu0 0.0
    %1430 = vmatprep.subr.mxu0 0.0
    %1431 = vmatpush1.xpose.msra.mxu0 0.0
    %1432 = vmatprep.subr.mxu0 0.0
    %1433 = vmatpush1.xpose.msra.mxu0 0.0
    %1434 = vmatprep.subr.mxu0 0.0
    %1435 = vmatpush1.xpose.msra.mxu0 0.0
    %1436 = vmatprep.subr.mxu0 0.0
    %1437 = vmatpush1.xpose.msra.mxu0 0.0
    %1438 = vmatprep.subr.mxu0 0.0
    %1439 = vmatpush1.xpose.msra.mxu0 0.0
    %1440 = vmatprep.subr.mxu0 0.0
    %1441 = vmatpush1.xpose.msra.mxu0 0.0
    %1442 = vmatprep.subr.mxu0 0.0
    %1443 = vmatpush1.xpose.msra.mxu0 0.0
    %1444 = vmatprep.subr.mxu0 0.0
    %1445 = vmatpush1.xpose.msra.mxu0 0.0
    %1446 = vmatprep.subr.mxu0 0.0
    %1447 = vmatpush1.xpose.msra.mxu0 0.0
    %1448 = vmatprep.subr.mxu0 0.0
    %1449 = vmatpush1.xpose.msra.mxu0 0.0
    %1450 = vmatprep.subr.mxu0 0.0
    %1451 = vmatpush1.xpose.msra.mxu0 0.0
    %1452 = vmatprep.subr.mxu0 0.0
    %1453 = vmatpush1.xpose.msra.mxu0 0.0
    %1454 = vmatprep.subr.mxu0 0.0
    %1455 = vmatpush1.xpose.msra.mxu0 0.0
    %1456 = vmatprep.subr.mxu0 0.0
    %1457 = vmatpush1.xpose.msra.mxu0 0.0
    %1458 = vmatprep.subr.mxu0 0.0
    %1459 = vmatpush1.xpose.msra.mxu0 0.0
    %1460 = vmatprep.subr.mxu0 0.0
    %1461 = vmatpush1.xpose.msra.mxu0 0.0
    %1462 = vmatprep.subr.mxu0 0.0
    %1463 = vmatpush1.xpose.msra.mxu0 0.0
    %1464 = vmatprep.subr.mxu0 0.0
    %1465 = vmatpush1.xpose.msra.mxu0 0.0
    %1466 = vmatprep.subr.mxu0 0.0
    %1467 = vmatpush1.xpose.msra.mxu0 0.0
    %1468 = vmatprep.subr.mxu0 0.0
    %1469 = vmatpush1.xpose.msra.mxu0 0.0
    %1470 = vmatprep.subr.mxu0 0.0
    %1471 = vmatpush1.xpose.msra.mxu0 0.0
    %1472 = vmatprep.mubr.f32.mxu0 0.0
    %1473 = vmatmul.mubr.f32.gmra.mrb[0].mxu0 %v1404
    %v1474 = vpop.f32.mrb[0].mxu0
    %v1475 = vadd.f32 0.0, %v1474
    %v1476 = vpop.f32.mrb[0].mxu0
    %1477 = vdwg.mxu0
    %1478 = vrot.lane.b32.xlu0 %v214, 104
    %v1479 = vpop.permute.xlu0 %1478
    %1480 = vrot.lane.b32.xlu0 %v299, 104
    %v1481 = vpop.permute.xlu0 %1480
    %v1482 = vsel %vm387, %v1479, 0
    %v1484 = vsel %vm387, %v1481, 0
    %1486 = vmatprep.subr.mxu0 0.0
    %1487 = vmatpush1.xpose.msra.mxu0 %v1484
    %1488 = vmatprep.subr.mxu0 0.0
    %1489 = vmatpush1.xpose.msra.mxu0 0.0
    %1490 = vmatprep.subr.mxu0 0.0
    %1491 = vmatpush1.xpose.msra.mxu0 0.0
    %1492 = vmatprep.subr.mxu0 0.0
    %1493 = vmatpush1.xpose.msra.mxu0 0.0
    %1494 = vmatprep.subr.mxu0 0.0
    %1495 = vmatpush1.xpose.msra.mxu0 0.0
    %1496 = vmatprep.subr.mxu0 0.0
    %1497 = vmatpush1.xpose.msra.mxu0 0.0
    %1498 = vmatprep.subr.mxu0 0.0
    %1499 = vmatpush1.xpose.msra.mxu0 0.0
    %1500 = vmatprep.subr.mxu0 0.0
    %1501 = vmatpush1.xpose.msra.mxu0 0.0
    %1502 = vmatprep.subr.mxu0 0.0
    %1503 = vmatpush1.xpose.msra.mxu0 0.0
    %1504 = vmatprep.subr.mxu0 0.0
    %1505 = vmatpush1.xpose.msra.mxu0 0.0
    %1506 = vmatprep.subr.mxu0 0.0
    %1507 = vmatpush1.xpose.msra.mxu0 0.0
    %1508 = vmatprep.subr.mxu0 0.0
    %1509 = vmatpush1.xpose.msra.mxu0 0.0
    %1510 = vmatprep.subr.mxu0 0.0
    %1511 = vmatpush1.xpose.msra.mxu0 0.0
    %1512 = vmatprep.subr.mxu0 0.0
    %1513 = vmatpush1.xpose.msra.mxu0 0.0
    %1514 = vmatprep.subr.mxu0 0.0
    %1515 = vmatpush1.xpose.msra.mxu0 0.0
    %1516 = vmatprep.subr.mxu0 0.0
    %1517 = vmatpush1.xpose.msra.mxu0 0.0
    %1518 = vmatprep.subr.mxu0 0.0
    %1519 = vmatpush1.xpose.msra.mxu0 0.0
    %1520 = vmatprep.subr.mxu0 0.0
    %1521 = vmatpush1.xpose.msra.mxu0 0.0
    %1522 = vmatprep.subr.mxu0 0.0
    %1523 = vmatpush1.xpose.msra.mxu0 0.0
    %1524 = vmatprep.subr.mxu0 0.0
    %1525 = vmatpush1.xpose.msra.mxu0 0.0
    %1526 = vmatprep.subr.mxu0 0.0
    %1527 = vmatpush1.xpose.msra.mxu0 0.0
    %1528 = vmatprep.subr.mxu0 0.0
    %1529 = vmatpush1.xpose.msra.mxu0 0.0
    %1530 = vmatprep.subr.mxu0 0.0
    %1531 = vmatpush1.xpose.msra.mxu0 0.0
    %1532 = vmatprep.subr.mxu0 0.0
    %1533 = vmatpush1.xpose.msra.mxu0 0.0
    %1534 = vmatprep.subr.mxu0 0.0
    %1535 = vmatpush1.xpose.msra.mxu0 0.0
    %1536 = vmatprep.subr.mxu0 0.0
    %1537 = vmatpush1.xpose.msra.mxu0 0.0
    %1538 = vmatprep.subr.mxu0 0.0
    %1539 = vmatpush1.xpose.msra.mxu0 0.0
    %1540 = vmatprep.subr.mxu0 0.0
    %1541 = vmatpush1.xpose.msra.mxu0 0.0
    %1542 = vmatprep.subr.mxu0 0.0
    %1543 = vmatpush1.xpose.msra.mxu0 0.0
    %1544 = vmatprep.subr.mxu0 0.0
    %1545 = vmatpush1.xpose.msra.mxu0 0.0
    %1546 = vmatprep.subr.mxu0 0.0
    %1547 = vmatpush1.xpose.msra.mxu0 0.0
    %1548 = vmatprep.subr.mxu0 0.0
    %1549 = vmatpush1.xpose.msra.mxu0 0.0
    %1550 = vmatprep.mubr.f32.mxu0 0.0
    %1551 = vmatmul.mubr.f32.gmra.mrb[0].mxu0 %v1482
    %v1552 = vpop.f32.mrb[0].mxu0
    %v1553 = vadd.f32 0.0, %v1552
    %v1554 = vpop.f32.mrb[0].mxu0
    %1555 = vdwg.mxu0
    %v1556 = vsel %vm387, %v1475, -inf
    %1557 = vmax.xlane.f32.xlu0 %v1556
    %v1558 = vpop.xlane.xlu0 %1557
    %v1559 = vsel %vm387, %v1553, -inf
    %1560 = vmax.xlane.f32.xlu0 %v1559
    %v1561 = vpop.xlane.xlu0 %1560
    %v1562 = vsub.f32 %v1475, %v1558
    %v1563 = vsub.f32 %v1553, %v1561
    %v1564 = vmul.f32 %v1562, 1.442695
    %v1565 = vpow.pop %v1564
    %v1566 = vmul.f32 %v1563, 1.442695
    %v1567 = vpow.pop %v1566
    %v1568 = vsel %vm387, %v1565, 0.0
    %1569 = vadd.xlane.f32.xlu0 %v1568
    %v1570 = vpop.xlane.xlu0 %1569
    %v1571 = vsel %vm387, %v1567, 0.0
    %1572 = vadd.xlane.f32.xlu0 %v1571
    %v1573 = vpop.xlane.xlu0 %1572
    %v1574 = vrcp.pop %v1570
    %v1575 = vmul.f32 %v1565, %v1574
    %v1576 = vrcp.pop %v1573
    %v1577 = vmul.f32 %v1567, %v1576
    %v1578 = vadd.f32 %v1235, %v1575
    %v1579 = vadd.f32 %v1236, %v1577
    %1580 = vrot.lane.b32.xlu0 %v379, 104
    %v1581 = vpop.permute.xlu0 %1580
    %v1584 = vsel %vm387, %v1575, 0
    %1586 = vmatprep.subr.mxu0 0.0
    %1587 = vmatpush1.msra.mxu0 %v1581
    %1588 = vmatprep.subr.mxu0 0.0
    %1589 = vmatpush1.msra.mxu0 0.0
    %1590 = vmatprep.subr.mxu0 0.0
    %1591 = vmatpush1.msra.mxu0 0.0
    %1592 = vmatprep.subr.mxu0 0.0
    %1593 = vmatpush1.msra.mxu0 0.0
    %1594 = vmatprep.subr.mxu0 0.0
    %1595 = vmatpush1.msra.mxu0 0.0
    %1596 = vmatprep.subr.mxu0 0.0
    %1597 = vmatpush1.msra.mxu0 0.0
    %1598 = vmatprep.subr.mxu0 0.0
    %1599 = vmatpush1.msra.mxu0 0.0
    %1600 = vmatprep.subr.mxu0 0.0
    %1601 = vmatpush1.msra.mxu0 0.0
    %1602 = vmatprep.subr.mxu0 0.0
    %1603 = vmatpush1.msra.mxu0 0.0
    %1604 = vmatprep.subr.mxu0 0.0
    %1605 = vmatpush1.msra.mxu0 0.0
    %1606 = vmatprep.subr.mxu0 0.0
    %1607 = vmatpush1.msra.mxu0 0.0
    %1608 = vmatprep.subr.mxu0 0.0
    %1609 = vmatpush1.msra.mxu0 0.0
    %1610 = vmatprep.subr.mxu0 0.0
    %1611 = vmatpush1.msra.mxu0 0.0
    %1612 = vmatprep.subr.mxu0 0.0
    %1613 = vmatpush1.msra.mxu0 0.0
    %1614 = vmatprep.subr.mxu0 0.0
    %1615 = vmatpush1.msra.mxu0 0.0
    %1616 = vmatprep.subr.mxu0 0.0
    %1617 = vmatpush1.msra.mxu0 0.0
    %1618 = vmatprep.subr.mxu0 0.0
    %1619 = vmatpush1.msra.mxu0 0.0
    %1620 = vmatprep.subr.mxu0 0.0
    %1621 = vmatpush1.msra.mxu0 0.0
    %1622 = vmatprep.subr.mxu0 0.0
    %1623 = vmatpush1.msra.mxu0 0.0
    %1624 = vmatprep.subr.mxu0 0.0
    %1625 = vmatpush1.msra.mxu0 0.0
    %1626 = vmatprep.subr.mxu0 0.0
    %1627 = vmatpush1.msra.mxu0 0.0
    %1628 = vmatprep.subr.mxu0 0.0
    %1629 = vmatpush1.msra.mxu0 0.0
    %1630 = vmatprep.subr.mxu0 0.0
    %1631 = vmatpush1.msra.mxu0 0.0
    %1632 = vmatprep.subr.mxu0 0.0
    %1633 = vmatpush1.msra.mxu0 0.0
    %1634 = vmatprep.subr.mxu0 0.0
    %1635 = vmatpush1.msra.mxu0 0.0
    %1636 = vmatprep.subr.mxu0 0.0
    %1637 = vmatpush1.msra.mxu0 0.0
    %1638 = vmatprep.subr.mxu0 0.0
    %1639 = vmatpush1.msra.mxu0 0.0
    %1640 = vmatprep.subr.mxu0 0.0
    %1641 = vmatpush1.msra.mxu0 0.0
    %1642 = vmatprep.subr.mxu0 0.0
    %1643 = vmatpush1.msra.mxu0 0.0
    %1644 = vmatprep.subr.mxu0 0.0
    %1645 = vmatpush1.msra.mxu0 0.0
    %1646 = vmatprep.subr.mxu0 0.0
    %1647 = vmatpush1.msra.mxu0 0.0
    %1648 = vmatprep.subr.mxu0 0.0
    %1649 = vmatpush1.msra.mxu0 0.0
    %1650 = vmatprep.mubr.f32.mxu0 0.0
    %1651 = vmatmul.mubr.f32.gmra.mrb[0].mxu0 %v1584
    %v1652 = vpop.f32.mrb[0].mxu0
    %v1653 = vadd.f32 0.0, %v1652
    %v1654 = vpop.f32.mrb[0].mxu0
    %1655 = vdwg.mxu0
    %1656 = vrot.lane.b32.xlu0 %v384, 104
    %v1657 = vpop.permute.xlu0 %1656
    %v1660 = vsel %vm387, %v1577, 0
    %1662 = vmatprep.subr.mxu0 0.0
    %1663 = vmatpush1.msra.mxu0 %v1657
    %1664 = vmatprep.subr.mxu0 0.0
    %1665 = vmatpush1.msra.mxu0 0.0
    %1666 = vmatprep.subr.mxu0 0.0
    %1667 = vmatpush1.msra.mxu0 0.0
    %1668 = vmatprep.subr.mxu0 0.0
    %1669 = vmatpush1.msra.mxu0 0.0
    %1670 = vmatprep.subr.mxu0 0.0
    %1671 = vmatpush1.msra.mxu0 0.0
    %1672 = vmatprep.subr.mxu0 0.0
    %1673 = vmatpush1.msra.mxu0 0.0
    %1674 = vmatprep.subr.mxu0 0.0
    %1675 = vmatpush1.msra.mxu0 0.0
    %1676 = vmatprep.subr.mxu0 0.0
    %1677 = vmatpush1.msra.mxu0 0.0
    %1678 = vmatprep.subr.mxu0 0.0
    %1679 = vmatpush1.msra.mxu0 0.0
    %1680 = vmatprep.subr.mxu0 0.0
    %1681 = vmatpush1.msra.mxu0 0.0
    %1682 = vmatprep.subr.mxu0 0.0
    %1683 = vmatpush1.msra.mxu0 0.0
    %1684 = vmatprep.subr.mxu0 0.0
    %1685 = vmatpush1.msra.mxu0 0.0
    %1686 = vmatprep.subr.mxu0 0.0
    %1687 = vmatpush1.msra.mxu0 0.0
    %1688 = vmatprep.subr.mxu0 0.0
    %1689 = vmatpush1.msra.mxu0 0.0
    %1690 = vmatprep.subr.mxu0 0.0
    %1691 = vmatpush1.msra.mxu0 0.0
    %1692 = vmatprep.subr.mxu0 0.0
    %1693 = vmatpush1.msra.mxu0 0.0
    %1694 = vmatprep.subr.mxu0 0.0
    %1695 = vmatpush1.msra.mxu0 0.0
    %1696 = vmatprep.subr.mxu0 0.0
    %1697 = vmatpush1.msra.mxu0 0.0
    %1698 = vmatprep.subr.mxu0 0.0
    %1699 = vmatpush1.msra.mxu0 0.0
    %1700 = vmatprep.subr.mxu0 0.0
    %1701 = vmatpush1.msra.mxu0 0.0
    %1702 = vmatprep.subr.mxu0 0.0
    %1703 = vmatpush1.msra.mxu0 0.0
    %1704 = vmatprep.subr.mxu0 0.0
    %1705 = vmatpush1.msra.mxu0 0.0
    %1706 = vmatprep.subr.mxu0 0.0
    %1707 = vmatpush1.msra.mxu0 0.0
    %1708 = vmatprep.subr.mxu0 0.0
    %1709 = vmatpush1.msra.mxu0 0.0
    %1710 = vmatprep.subr.mxu0 0.0
    %1711 = vmatpush1.msra.mxu0 0.0
    %1712 = vmatprep.subr.mxu0 0.0
    %1713 = vmatpush1.msra.mxu0 0.0
    %1714 = vmatprep.subr.mxu0 0.0
    %1715 = vmatpush1.msra.mxu0 0.0
    %1716 = vmatprep.subr.mxu0 0.0
    %1717 = vmatpush1.msra.mxu0 0.0
    %1718 = vmatprep.subr.mxu0 0.0
    %1719 = vmatpush1.msra.mxu0 0.0
    %1720 = vmatprep.subr.mxu0 0.0
    %1721 = vmatpush1.msra.mxu0 0.0
    %1722 = vmatprep.subr.mxu0 0.0
    %1723 = vmatpush1.msra.mxu0 0.0
    %1724 = vmatprep.subr.mxu0 0.0
    %1725 = vmatpush1.msra.mxu0 0.0
    %1726 = vmatprep.mubr.f32.mxu0 0.0
    %1727 = vmatmul.mubr.f32.gmra.mrb[0].mxu0 %v1660
    %v1728 = vpop.f32.mrb[0].mxu0
    %v1729 = vadd.f32 0.0, %v1728
    %v1730 = vpop.f32.mrb[0].mxu0
    %1731 = vdwg.mxu0
    %1734 = vrot.lane.b32.xlu0 %v1653, 24
    %v1735 = vpop.permute.xlu0 %1734
    %1736 = vrot.lane.b32.xlu0 %v1729, 24
    %v1737 = vpop.permute.xlu0 %1736
    %vm1740 = vcmask 261312
    %1741 = vst.msk [vmem:[#allocation2] sm:$0xff] %vm1740, %v1735
    %1742 = vst.msk [vmem:[#allocation2 + $0x8] sm:$0xff] %vm1740, %v1737
    %v1743 = vld [vmem:[#allocation2] sm:$0xff]
    %v1744 = vld [vmem:[#allocation2 + $0x8] sm:$0xff]
    %v1745 = vld [vmem:[#allocation14] sm:$0xff]
    %v1746 = vld [vmem:[#allocation14 + $0x8] sm:$0xff]
    %v1747 = vld [vmem:[#allocation14 + $0x10] sm:$0xff]
    %v1748 = vld [vmem:[#allocation14 + $0x18] sm:$0xff]
    %v1750 = vsel %vm135, %v1743, 0
    %v1753 = vsel %vm135, %v1744, 0
    %1755 = vmatprep.subr.mxu0 0.0
    %1756 = vmatpush1.msra.mxu0 %v1745
    %1757 = vmatprep.subr.mxu0 0.0
    %1758 = vmatpush1.msra.mxu0 %v1746
    %1759 = vmatprep.subr.mxu0 0.0
    %1760 = vmatpush1.msra.mxu0 %v1747
    %1761 = vmatprep.subr.mxu0 0.0
    %1762 = vmatpush1.msra.mxu0 %v1748
    %1763 = vmatprep.subr.mxu0 0.0
    %1764 = vmatpush1.msra.mxu0 0.0
    %1765 = vmatprep.subr.mxu0 0.0
    %1766 = vmatpush1.msra.mxu0 0.0
    %1767 = vmatprep.subr.mxu0 0.0
    %1768 = vmatpush1.msra.mxu0 0.0
    %1769 = vmatprep.subr.mxu0 0.0
    %1770 = vmatpush1.msra.mxu0 0.0
    %1771 = vmatprep.subr.mxu0 0.0
    %1772 = vmatpush1.msra.mxu0 0.0
    %1773 = vmatprep.subr.mxu0 0.0
    %1774 = vmatpush1.msra.mxu0 0.0
    %1775 = vmatprep.subr.mxu0 0.0
    %1776 = vmatpush1.msra.mxu0 0.0
    %1777 = vmatprep.subr.mxu0 0.0
    %1778 = vmatpush1.msra.mxu0 0.0
    %1779 = vmatprep.subr.mxu0 0.0
    %1780 = vmatpush1.msra.mxu0 0.0
    %1781 = vmatprep.subr.mxu0 0.0
    %1782 = vmatpush1.msra.mxu0 0.0
    %1783 = vmatprep.subr.mxu0 0.0
    %1784 = vmatpush1.msra.mxu0 0.0
    %1785 = vmatprep.subr.mxu0 0.0
    %1786 = vmatpush1.msra.mxu0 0.0
    %1787 = vmatprep.subr.mxu0 0.0
    %1788 = vmatpush1.msra.mxu0 0.0
    %1789 = vmatprep.subr.mxu0 0.0
    %1790 = vmatpush1.msra.mxu0 0.0
    %1791 = vmatprep.subr.mxu0 0.0
    %1792 = vmatpush1.msra.mxu0 0.0
    %1793 = vmatprep.subr.mxu0 0.0
    %1794 = vmatpush1.msra.mxu0 0.0
    %1795 = vmatprep.subr.mxu0 0.0
    %1796 = vmatpush1.msra.mxu0 0.0
    %1797 = vmatprep.subr.mxu0 0.0
    %1798 = vmatpush1.msra.mxu0 0.0
    %1799 = vmatprep.subr.mxu0 0.0
    %1800 = vmatpush1.msra.mxu0 0.0
    %1801 = vmatprep.subr.mxu0 0.0
    %1802 = vmatpush1.msra.mxu0 0.0
    %1803 = vmatprep.subr.mxu0 0.0
    %1804 = vmatpush1.msra.mxu0 0.0
    %1805 = vmatprep.subr.mxu0 0.0
    %1806 = vmatpush1.msra.mxu0 0.0
    %1807 = vmatprep.subr.mxu0 0.0
    %1808 = vmatpush1.msra.mxu0 0.0
    %1809 = vmatprep.subr.mxu0 0.0
    %1810 = vmatpush1.msra.mxu0 0.0
    %1811 = vmatprep.subr.mxu0 0.0
    %1812 = vmatpush1.msra.mxu0 0.0
    %1813 = vmatprep.subr.mxu0 0.0
    %1814 = vmatpush1.msra.mxu0 0.0
    %1815 = vmatprep.subr.mxu0 0.0
    %1816 = vmatpush1.msra.mxu0 0.0
    %1817 = vmatprep.subr.mxu0 0.0
    %1818 = vmatpush1.msra.mxu0 0.0
    %1819 = vmatprep.mubr.f32.mxu0 0.0
    %1820 = vmatmul.mubr.f32.gmra.mrb[0].mxu0 %v1750
    %v1821 = vpop.f32.mrb[0].mxu0
    %v1822 = vadd.f32 0.0, %v1821
    %v1823 = vpop.f32.mrb[0].mxu0
    %1824 = vmatprep.mubr.f32.mxu0 0.0
    %1825 = vmatmul.mubr.f32.gmra.mrb[0].mxu0 %v1753
    %v1826 = vpop.f32.mrb[0].mxu0
    %v1827 = vadd.f32 0.0, %v1826
    %v1828 = vpop.f32.mrb[0].mxu0
    %1829 = vdwg.mxu0
    %1830 = vst.msk [vmem:[#allocation15] sm:$0xff] %vm135, %v1822
    %1831 = vst.msk [vmem:[#allocation15 + $0x8] sm:$0xff] %vm135, %v1827
    %v1832 = vmul.f32 %v1578, 0.25
    %v1833 = vmul.f32 %v1579, 0.25
    %1834 = vst.msk [vmem:[#allocation16] sm:$0xff] %vm387, %v1832
    %1835 = vst.msk [vmem:[#allocation16 + $0x8] sm:$0xff] %vm387, %v1833
    // Predicated region
    $region58: #{tpu_custom_call.1} parent=1 // pred_check
      _
    $region59: #{tpu_custom_call.1} parent=1 // pred_check_branch
      %1837 = sbr.rel (0) target = $region61
    $region60: #{tpu_custom_call.1} parent=1 // pred_region
      %s1839 = ssub.s32 256, 256
      %1840 = vsyncadd [#allocation5], %s1839
      %s1841 = sshll.u32 [#allocation15], 4
      %s1842 = int_to_ptr.vmem [resolvable:$true] %s1841
      %1847 = dma.vmem_to_hbm [thread:$0]  %s1842, 256, %s7, [#allocation5], 128, 128, 8
    $region61: #{tpu_custom_call.1} parent=1 // pred_fallthru
      _
    // Predicated region
    $region62: #{tpu_custom_call.1} parent=1 // pred_check
      _
    $region63: #{tpu_custom_call.1} parent=1 // pred_check_branch
      %1849 = sbr.rel (0) target = $region65
    $region64: #{tpu_custom_call.1} parent=1 // pred_region
      %s1851 = ssub.s32 256, 256
      %1852 = vsyncadd [#allocation17], %s1851
      %s1853 = sshll.u32 [#allocation16], 4
      %s1854 = int_to_ptr.vmem [resolvable:$true] %s1853
      %1859 = dma.vmem_to_hbm [thread:$0]  %s1854, 256, %s8, [#allocation17], 128, 128, 8
    $region65: #{tpu_custom_call.1} parent=1 // pred_fallthru
      _
    // Predicated region
    $region66: #{tpu_custom_call.1} parent=1 // pred_check
      _
    $region67: #{tpu_custom_call.1} parent=1 // pred_check_branch
      %1861 = sbr.rel (0) target = $region69
    $region68: #{tpu_custom_call.1} parent=1 // pred_region
      %1862 = dma.done [#allocation5], 256
    $region69: #{tpu_custom_call.1} parent=1 // pred_fallthru
      _
    // Predicated region
    $region70: #{tpu_custom_call.1} parent=1 // pred_check
      _
    $region71: #{tpu_custom_call.1} parent=1 // pred_check_branch
      %1864 = sbr.rel (0) target = $region73
    $region72: #{tpu_custom_call.1} parent=1 // pred_region
      %1865 = dma.done [#allocation17], 256
    $region73: #{tpu_custom_call.1} parent=1 // pred_fallthru
      _
    %1866 = vsyncpa [#allocation4], 1
    %1867 = vsyncpa [#allocation7], 1
    %1868 = vsyncpa [#allocation10], 1
    %1869 = vsyncpa [#allocation13], 1
    %1870 = vsyncpa [#allocation5], 1
    %1871 = vsyncpa [#allocation17], 1

</llo_original>
